<compile_context>
chip_gen: v7x
topology: tpu7x:2x2x1
jax: 0.10.0
libtpu: 0.0.40
codegen_flags: <defaults>
</compile_context>

<pallas_src>
import numpy as np
import jax
import jax.numpy as jnp
from jax import lax
from jax.experimental import pallas as pl
from jax.experimental.pallas import tpu as pltpu


# ---------------------------------------------------------------------------
# Fused kernel: one grid step == one image.
# ---------------------------------------------------------------------------
def _residual_block_kernel(xp_ref, m1_ref, s1_ref, b1_ref,
                           m2_ref, s2_ref, b2_ref,
                           ms_ref, ss_ref, bs_ref, o_ref):
    """xp_ref : [1, Hp, Wp*Cin]   zero-padded input, (W,C) packed into lanes
       m1_ref : [3, Wp*Cin,  Wp*Cout]  banded conv1 weights (output in padded-W cols)
       s1/b1  : [1, Wp*Cout]           folded BN1 scale/bias (zeros at pad cols)
       m2_ref : [3, Wp*Cout, W*Cout]   banded conv2 weights (output unpadded)
       s2/b2  : [1, W*Cout]
       ms_ref : [Wp*Cin, W*Cout]       banded 1x1 shortcut weights
       ss/bs  : [1, W*Cout]
       o_ref  : [1, H, W*Cout]         lane-dense output (W*Cout multiple of 128)
    """
    H = o_ref.shape[1]
    wp_cout = m1_ref.shape[2]
    w_cout = o_ref.shape[2]

    # ---- conv1 + BN1 + ReLU : 3 fat matmuls, result already in padded-W layout.
    acc1 = jnp.zeros((H, wp_cout), jnp.float32)
    for ky in range(3):
        acc1 += jnp.dot(xp_ref[0, ky:ky + H, :], m1_ref[ky],
                        preferred_element_type=jnp.float32)
    # pad columns have zero scale AND zero bias, so they stay exactly 0.
    mid = jnp.maximum(acc1 * s1_ref[...] + b1_ref[...], 0.0)

    # ---- pad H in-register (the intermediate never touches HBM).
    zrow = jnp.zeros((1, wp_cout), jnp.float32)
    midp = jnp.concatenate([zrow, mid, zrow], axis=0)        # [Hp, Wp*Cout]

    # ---- conv2 + BN2.
    acc2 = jnp.zeros((H, w_cout), jnp.float32)
    for ky in range(3):
        acc2 += jnp.dot(midp[ky:ky + H, :], m2_ref[ky],
                        preferred_element_type=jnp.float32)
    out2 = acc2 * s2_ref[...] + b2_ref[...]

    # ---- 1x1-conv + BN shortcut, reusing the input rows already in VMEM.
    sc = jnp.dot(xp_ref[0, 1:1 + H, :], ms_ref[...],
                 preferred_element_type=jnp.float32)
    sc = sc * ss_ref[...] + bs_ref[...]

    o_ref[0] = jnp.maximum(out2 + sc, 0.0).astype(o_ref.dtype)


# ---------------------------------------------------------------------------
# Host-side helpers: banded weight matrices + folded BN rows.
# ---------------------------------------------------------------------------
def _band_matrices(w_hwio, W, *, out_padded):
    """Turn a (kh, kw, Cin, Cout) conv weight into kh banded matrices so that a
    1-D conv along W becomes a single matmul over lane-packed (W*C) rows.

    Input rows are assumed in padded-W layout (Wp = W+2 positions of Cin each).
    Output columns are padded-W layout if out_padded else W positions of Cout.
    Returns [kh, Wp*Cin, Wcols*Cout].
    """
    kh, kw, cin, cout = w_hwio.shape
    Wp = W + 2
    wcols = Wp if out_padded else W
    out_off = 1 if out_padded else 0
    in_off = 1 - kw // 2          # 3x3: 0 (pad cancels -1); 1x1: 1 (skip pad col)

    sel = np.zeros((kw, Wp, wcols), np.float32)
    for kx in range(kw):
        for w in range(W):
            sel[kx, w + kx + in_off, w + out_off] = 1.0

    m = jnp.einsum("kxio,xrc->krico", w_hwio, jnp.asarray(sel))
    return m.reshape(kh, Wp * cin, wcols * cout)


def _fold_bn_rows(gamma, beta, mean, var, W, *, padded, eps=1e-5):
    """Fold BN into per-lane-column (scale, bias) rows matching the packed layout."""
    s = gamma / jnp.sqrt(var + eps)
    b = beta - mean * s
    c = gamma.shape[0]
    if padded:
        z = jnp.zeros((c,), jnp.float32)
        srow = jnp.concatenate([z, jnp.tile(s, W), z])
        brow = jnp.concatenate([z, jnp.tile(b, W), z])
    else:
        srow, brow = jnp.tile(s, W), jnp.tile(b, W)
    return srow.reshape(1, -1).astype(jnp.float32), brow.reshape(1, -1).astype(jnp.float32)


# ---------------------------------------------------------------------------
# Wrapper.
# ---------------------------------------------------------------------------
def residual_block_forward(x_nchw, params):
    """Pallas implementation of ResidualBlock.forward (stride=1, conv shortcut)."""
    x = jnp.transpose(x_nchw, (0, 2, 3, 1)).astype(jnp.float32)   # NCHW -> NHWC
    N, H, W, Cin = x.shape
    w1, w2, ws = params["w1"], params["w2"], params["ws"]
    Cout = w1.shape[-1]
    Hp, Wp = H + 2, W + 2

    # Boundary glue only: pad the *input* once and pack (W, C) into the lane axis.
    xp = jnp.pad(x, ((0, 0), (1, 1), (1, 1), (0, 0))).reshape(N, Hp, Wp * Cin)

    m1 = _band_matrices(w1, W, out_padded=True)                           # [3, Wp*Cin,  Wp*Cout]
    m2 = _band_matrices(w2, W, out_padded=False)                          # [3, Wp*Cout, W*Cout]
    msc = _band_matrices(ws.reshape(1, 1, Cin, Cout), W, out_padded=False)[0]  # [Wp*Cin, W*Cout]

    s1, b1 = _fold_bn_rows(params["bn1_gamma"], params["bn1_beta"],
                           params["bn1_mean"], params["bn1_var"], W, padded=True)
    s2, b2 = _fold_bn_rows(params["bn2_gamma"], params["bn2_beta"],
                           params["bn2_mean"], params["bn2_var"], W, padded=False)
    ss, bs = _fold_bn_rows(params["bns_gamma"], params["bns_beta"],
                           params["bns_mean"], params["bns_var"], W, padded=False)

    def _full(a):
        return pl.BlockSpec(a.shape, lambda n, _nd=a.ndim: (0,) * _nd)

    y = pl.pallas_call(
        _residual_block_kernel,
        grid=(N,),
        in_specs=[pl.BlockSpec((1, Hp, Wp * Cin), lambda n: (n, 0, 0)),
                  _full(m1), _full(s1), _full(b1),
                  _full(m2), _full(s2), _full(b2),
                  _full(msc), _full(ss), _full(bs)],
        out_specs=pl.BlockSpec((1, H, W * Cout), lambda n: (n, 0, 0)),
        out_shape=jax.ShapeDtypeStruct((N, H, W * Cout), jnp.float32),
        compiler_params=pltpu.CompilerParams(
            dimension_semantics=("parallel",)),   # shard batch over v7x's 2 TCs
    )(xp, m1, s1, b1, m2, s2, b2, msc, ss, bs)

    y = y.reshape(N, H, W, Cout)
    return jnp.transpose(y, (0, 3, 1, 2))          # NHWC -> NCHW


# ---------------------------------------------------------------------------
# Pure-JAX reference (for correctness checking).
# ---------------------------------------------------------------------------
def _reference(x_nchw, params, eps=1e-5):
    x = jnp.transpose(x_nchw, (0, 2, 3, 1)).astype(jnp.float32)
    dn = ("NHWC", "HWIO", "NHWC")

    def conv(a, w):
        return lax.conv_general_dilated(a, w, (1, 1), "SAME", dimension_numbers=dn)

    def bn(a, g, b, m, v):
        return (a - m) / jnp.sqrt(v + eps) * g + b

    o = jax.nn.relu(bn(conv(x, params["w1"]), params["bn1_gamma"],
                       params["bn1_beta"], params["bn1_mean"], params["bn1_var"]))
    o = bn(conv(o, params["w2"]), params["bn2_gamma"],
           params["bn2_beta"], params["bn2_mean"], params["bn2_var"])
    sc = bn(jnp.einsum("nhwc,cd->nhwd", x, params["ws"]), params["bns_gamma"],
            params["bns_beta"], params["bns_mean"], params["bns_var"])
    return jnp.transpose(jax.nn.relu(o + sc), (0, 3, 1, 2))


if __name__ == "__main__":
    N, Cin, Cout, H, W = 2, 4, 8, 16, 16
    key = jax.random.PRNGKey(0)
    ks = jax.random.split(key, 16)

    params = {
        "w1": jax.random.normal(ks[0], (3, 3, Cin, Cout), jnp.float32) * 0.1,
        "w2": jax.random.normal(ks[1], (3, 3, Cout, Cout), jnp.float32) * 0.1,
        "ws": jax.random.normal(ks[2], (Cin, Cout), jnp.float32) * 0.1,
        "bn1_gamma": jax.random.uniform(ks[3], (Cout,), jnp.float32, 0.5, 1.5),
        "bn1_beta":  jax.random.normal(ks[4], (Cout,), jnp.float32) * 0.1,
        "bn1_mean":  jax.random.normal(ks[5], (Cout,), jnp.float32) * 0.1,
        "bn1_var":   jax.random.uniform(ks[6], (Cout,), jnp.float32, 0.5, 1.5),
        "bn2_gamma": jax.random.uniform(ks[7], (Cout,), jnp.float32, 0.5, 1.5),
        "bn2_beta":  jax.random.normal(ks[8], (Cout,), jnp.float32) * 0.1,
        "bn2_mean":  jax.random.normal(ks[9], (Cout,), jnp.float32) * 0.1,
        "bn2_var":   jax.random.uniform(ks[10], (Cout,), jnp.float32, 0.5, 1.5),
        "bns_gamma": jax.random.uniform(ks[11], (Cout,), jnp.float32, 0.5, 1.5),
        "bns_beta":  jax.random.normal(ks[12], (Cout,), jnp.float32) * 0.1,
        "bns_mean":  jax.random.normal(ks[13], (Cout,), jnp.float32) * 0.1,
        "bns_var":   jax.random.uniform(ks[14], (Cout,), jnp.float32, 0.5, 1.5),
    }

    x = jax.random.normal(ks[15], (N, Cin, H, W), jnp.float32)   # PyTorch NCHW input

    y = residual_block_forward(x, params)
    y = jax.block_until_ready(y)

    y_ref = _reference(x, params)
    assert y.shape == (N, Cout, H, W)
    assert jnp.max(jnp.abs(y - y_ref)) < 1e-4, "Pallas output mismatch vs JAX reference"

    print("KERNEL_OK")
</pallas_src>

<mosaic_0001>
module attributes {stable_mosaic.version = 11 : i64} {
  func.func @_residual_block_kernel(%arg0: i32, %arg1: memref<1x18x72xf32, #tpu.memory_space<vmem>>, %arg2: memref<3x72x144xf32, #tpu.memory_space<vmem>>, %arg3: memref<1x144xf32, #tpu.memory_space<vmem>>, %arg4: memref<1x144xf32, #tpu.memory_space<vmem>>, %arg5: memref<3x144x128xf32, #tpu.memory_space<vmem>>, %arg6: memref<1x128xf32, #tpu.memory_space<vmem>>, %arg7: memref<1x128xf32, #tpu.memory_space<vmem>>, %arg8: memref<72x128xf32, #tpu.memory_space<vmem>>, %arg9: memref<1x128xf32, #tpu.memory_space<vmem>>, %arg10: memref<1x128xf32, #tpu.memory_space<vmem>>, %arg11: memref<1x16x128xf32, #tpu.memory_space<vmem>>) attributes {dimension_semantics = [#tpu.dimension_semantics<parallel>], iteration_bounds = array<i64: 2>, scalar_prefetch = 0 : i64, scratch_operands = 0 : i64, tpu.core_type = #tpu.core_type<tc>, window_params = [{transform_indices = @transform_0, window_bounds = array<i64: 1, 18, 72>}, {pipeline_mode = #tpu.pipeline_mode<synchronous>, transform_indices = @transform_1, window_bounds = array<i64: 3, 72, 144>}, {pipeline_mode = #tpu.pipeline_mode<synchronous>, transform_indices = @transform_2, window_bounds = array<i64: 1, 144>}, {pipeline_mode = #tpu.pipeline_mode<synchronous>, transform_indices = @transform_3, window_bounds = array<i64: 1, 144>}, {pipeline_mode = #tpu.pipeline_mode<synchronous>, transform_indices = @transform_4, window_bounds = array<i64: 3, 144, 128>}, {pipeline_mode = #tpu.pipeline_mode<synchronous>, transform_indices = @transform_5, window_bounds = array<i64: 1, 128>}, {pipeline_mode = #tpu.pipeline_mode<synchronous>, transform_indices = @transform_6, window_bounds = array<i64: 1, 128>}, {pipeline_mode = #tpu.pipeline_mode<synchronous>, transform_indices = @transform_7, window_bounds = array<i64: 72, 128>}, {pipeline_mode = #tpu.pipeline_mode<synchronous>, transform_indices = @transform_8, window_bounds = array<i64: 1, 128>}, {pipeline_mode = #tpu.pipeline_mode<synchronous>, transform_indices = @transform_9, window_bounds = array<i64: 1, 128>}, {transform_indices = @transform_10, window_bounds = array<i64: 1, 16, 128>}]} {
    %cst = arith.constant 0.000000e+00 : f32
    %0 = vector.broadcast %cst : f32 to vector<16x144xf32>
    %c0 = arith.constant 0 : index
    %c0_0 = arith.constant 0 : index
    %c0_1 = arith.constant 0 : index
    %1 = vector.load %arg1[%c0, %c0_0, %c0_1] : memref<1x18x72xf32, #tpu.memory_space<vmem>>, vector<1x16x72xf32>
    %2 = vector.shape_cast %1 : vector<1x16x72xf32> to vector<16x72xf32>
    %c0_2 = arith.constant 0 : index
    %c0_3 = arith.constant 0 : index
    %c0_4 = arith.constant 0 : index
    %3 = vector.load %arg2[%c0_2, %c0_3, %c0_4] : memref<3x72x144xf32, #tpu.memory_space<vmem>>, vector<1x72x144xf32>
    %4 = vector.shape_cast %3 : vector<1x72x144xf32> to vector<72x144xf32>
    %cst_5 = arith.constant dense<0.000000e+00> : vector<16x144xf32>
    %5 = tpu.matmul %2, %4, %cst_5 {dimension_numbers = #tpu.dot_dimension_numbers<[1], [0], [0], [1], [0, 0, 1, 1], [], []>} : vector<16x72xf32>, vector<72x144xf32>, vector<16x144xf32> -> vector<16x144xf32>
    %6 = arith.addf %0, %5 : vector<16x144xf32>
    %c0_6 = arith.constant 0 : index
    %c1 = arith.constant 1 : index
    %c0_7 = arith.constant 0 : index
    %7 = vector.load %arg1[%c0_6, %c1, %c0_7] : memref<1x18x72xf32, #tpu.memory_space<vmem>>, vector<1x16x72xf32>
    %8 = vector.shape_cast %7 : vector<1x16x72xf32> to vector<16x72xf32>
    %c1_8 = arith.constant 1 : index
    %c0_9 = arith.constant 0 : index
    %c0_10 = arith.constant 0 : index
    %9 = vector.load %arg2[%c1_8, %c0_9, %c0_10] : memref<3x72x144xf32, #tpu.memory_space<vmem>>, vector<1x72x144xf32>
    %10 = vector.shape_cast %9 : vector<1x72x144xf32> to vector<72x144xf32>
    %cst_11 = arith.constant dense<0.000000e+00> : vector<16x144xf32>
    %11 = tpu.matmul %8, %10, %cst_11 {dimension_numbers = #tpu.dot_dimension_numbers<[1], [0], [0], [1], [0, 0, 1, 1], [], []>} : vector<16x72xf32>, vector<72x144xf32>, vector<16x144xf32> -> vector<16x144xf32>
    %12 = arith.addf %6, %11 : vector<16x144xf32>
    %c0_12 = arith.constant 0 : index
    %c2 = arith.constant 2 : index
    %c0_13 = arith.constant 0 : index
    %13 = vector.load %arg1[%c0_12, %c2, %c0_13] : memref<1x18x72xf32, #tpu.memory_space<vmem>>, vector<1x16x72xf32>
    %14 = vector.shape_cast %13 : vector<1x16x72xf32> to vector<16x72xf32>
    %c2_14 = arith.constant 2 : index
    %c0_15 = arith.constant 0 : index
    %c0_16 = arith.constant 0 : index
    %15 = vector.load %arg2[%c2_14, %c0_15, %c0_16] : memref<3x72x144xf32, #tpu.memory_space<vmem>>, vector<1x72x144xf32>
    %16 = vector.shape_cast %15 : vector<1x72x144xf32> to vector<72x144xf32>
    %cst_17 = arith.constant dense<0.000000e+00> : vector<16x144xf32>
    %17 = tpu.matmul %14, %16, %cst_17 {dimension_numbers = #tpu.dot_dimension_numbers<[1], [0], [0], [1], [0, 0, 1, 1], [], []>} : vector<16x72xf32>, vector<72x144xf32>, vector<16x144xf32> -> vector<16x144xf32>
    %18 = arith.addf %12, %17 : vector<16x144xf32>
    %c0_18 = arith.constant 0 : index
    %c0_19 = arith.constant 0 : index
    %19 = vector.load %arg3[%c0_18, %c0_19] : memref<1x144xf32, #tpu.memory_space<vmem>>, vector<1x144xf32>
    %20 = vector.broadcast %19 : vector<1x144xf32> to vector<16x144xf32>
    %21 = arith.mulf %18, %20 : vector<16x144xf32>
    %c0_20 = arith.constant 0 : index
    %c0_21 = arith.constant 0 : index
    %22 = vector.load %arg4[%c0_20, %c0_21] : memref<1x144xf32, #tpu.memory_space<vmem>>, vector<1x144xf32>
    %23 = vector.broadcast %22 : vector<1x144xf32> to vector<16x144xf32>
    %24 = arith.addf %21, %23 : vector<16x144xf32>
    %cst_22 = arith.constant 0.000000e+00 : f32
    %25 = vector.broadcast %cst_22 : f32 to vector<16x144xf32>
    %26 = arith.maximumf %24, %25 : vector<16x144xf32>
    %cst_23 = arith.constant 0.000000e+00 : f32
    %27 = vector.broadcast %cst_23 : f32 to vector<1x144xf32>
    %28 = tpu.concatenate %27, %26, %27 in 0 : vector<1x144xf32>, vector<16x144xf32>, vector<1x144xf32> -> vector<18x144xf32>
    %cst_24 = arith.constant 0.000000e+00 : f32
    %29 = vector.broadcast %cst_24 : f32 to vector<16x128xf32>
    %30 = vector.extract_strided_slice %28 {offsets = [0, 0], sizes = [16, 144], strides = [1, 1]} : vector<18x144xf32> to vector<16x144xf32>
    %c0_25 = arith.constant 0 : index
    %c0_26 = arith.constant 0 : index
    %c0_27 = arith.constant 0 : index
    %31 = vector.load %arg5[%c0_25, %c0_26, %c0_27] : memref<3x144x128xf32, #tpu.memory_space<vmem>>, vector<1x144x128xf32>
    %32 = vector.shape_cast %31 : vector<1x144x128xf32> to vector<144x128xf32>
    %cst_28 = arith.constant dense<0.000000e+00> : vector<16x128xf32>
    %33 = tpu.matmul %30, %32, %cst_28 {dimension_numbers = #tpu.dot_dimension_numbers<[1], [0], [0], [1], [0, 0, 1, 1], [], []>} : vector<16x144xf32>, vector<144x128xf32>, vector<16x128xf32> -> vector<16x128xf32>
    %34 = arith.addf %29, %33 : vector<16x128xf32>
    %35 = vector.extract_strided_slice %28 {offsets = [1, 0], sizes = [16, 144], strides = [1, 1]} : vector<18x144xf32> to vector<16x144xf32>
    %c1_29 = arith.constant 1 : index
    %c0_30 = arith.constant 0 : index
    %c0_31 = arith.constant 0 : index
    %36 = vector.load %arg5[%c1_29, %c0_30, %c0_31] : memref<3x144x128xf32, #tpu.memory_space<vmem>>, vector<1x144x128xf32>
    %37 = vector.shape_cast %36 : vector<1x144x128xf32> to vector<144x128xf32>
    %cst_32 = arith.constant dense<0.000000e+00> : vector<16x128xf32>
    %38 = tpu.matmul %35, %37, %cst_32 {dimension_numbers = #tpu.dot_dimension_numbers<[1], [0], [0], [1], [0, 0, 1, 1], [], []>} : vector<16x144xf32>, vector<144x128xf32>, vector<16x128xf32> -> vector<16x128xf32>
    %39 = arith.addf %34, %38 : vector<16x128xf32>
    %40 = vector.extract_strided_slice %28 {offsets = [2, 0], sizes = [16, 144], strides = [1, 1]} : vector<18x144xf32> to vector<16x144xf32>
    %c2_33 = arith.constant 2 : index
    %c0_34 = arith.constant 0 : index
    %c0_35 = arith.constant 0 : index
    %41 = vector.load %arg5[%c2_33, %c0_34, %c0_35] : memref<3x144x128xf32, #tpu.memory_space<vmem>>, vector<1x144x128xf32>
    %42 = vector.shape_cast %41 : vector<1x144x128xf32> to vector<144x128xf32>
    %cst_36 = arith.constant dense<0.000000e+00> : vector<16x128xf32>
    %43 = tpu.matmul %40, %42, %cst_36 {dimension_numbers = #tpu.dot_dimension_numbers<[1], [0], [0], [1], [0, 0, 1, 1], [], []>} : vector<16x144xf32>, vector<144x128xf32>, vector<16x128xf32> -> vector<16x128xf32>
    %44 = arith.addf %39, %43 : vector<16x128xf32>
    %c0_37 = arith.constant 0 : index
    %c0_38 = arith.constant 0 : index
    %45 = vector.load %arg6[%c0_37, %c0_38] : memref<1x128xf32, #tpu.memory_space<vmem>>, vector<1x128xf32>
    %46 = vector.broadcast %45 : vector<1x128xf32> to vector<16x128xf32>
    %47 = arith.mulf %44, %46 : vector<16x128xf32>
    %c0_39 = arith.constant 0 : index
    %c0_40 = arith.constant 0 : index
    %48 = vector.load %arg7[%c0_39, %c0_40] : memref<1x128xf32, #tpu.memory_space<vmem>>, vector<1x128xf32>
    %49 = vector.broadcast %48 : vector<1x128xf32> to vector<16x128xf32>
    %50 = arith.addf %47, %49 : vector<16x128xf32>
    %c0_41 = arith.constant 0 : index
    %c1_42 = arith.constant 1 : index
    %c0_43 = arith.constant 0 : index
    %51 = vector.load %arg1[%c0_41, %c1_42, %c0_43] : memref<1x18x72xf32, #tpu.memory_space<vmem>>, vector<1x16x72xf32>
    %52 = vector.shape_cast %51 : vector<1x16x72xf32> to vector<16x72xf32>
    %c0_44 = arith.constant 0 : index
    %c0_45 = arith.constant 0 : index
    %53 = vector.load %arg8[%c0_44, %c0_45] : memref<72x128xf32, #tpu.memory_space<vmem>>, vector<72x128xf32>
    %cst_46 = arith.constant dense<0.000000e+00> : vector<16x128xf32>
    %54 = tpu.matmul %52, %53, %cst_46 {dimension_numbers = #tpu.dot_dimension_numbers<[1], [0], [0], [1], [0, 0, 1, 1], [], []>} : vector<16x72xf32>, vector<72x128xf32>, vector<16x128xf32> -> vector<16x128xf32>
    %c0_47 = arith.constant 0 : index
    %c0_48 = arith.constant 0 : index
    %55 = vector.load %arg9[%c0_47, %c0_48] : memref<1x128xf32, #tpu.memory_space<vmem>>, vector<1x128xf32>
    %56 = vector.broadcast %55 : vector<1x128xf32> to vector<16x128xf32>
    %57 = arith.mulf %54, %56 : vector<16x128xf32>
    %c0_49 = arith.constant 0 : index
    %c0_50 = arith.constant 0 : index
    %58 = vector.load %arg10[%c0_49, %c0_50] : memref<1x128xf32, #tpu.memory_space<vmem>>, vector<1x128xf32>
    %59 = vector.broadcast %58 : vector<1x128xf32> to vector<16x128xf32>
    %60 = arith.addf %57, %59 : vector<16x128xf32>
    %61 = arith.addf %50, %60 : vector<16x128xf32>
    %cst_51 = arith.constant 0.000000e+00 : f32
    %62 = vector.broadcast %cst_51 : f32 to vector<16x128xf32>
    %63 = arith.maximumf %61, %62 : vector<16x128xf32>
    %c0_52 = arith.constant 0 : index
    %c0_53 = arith.constant 0 : index
    %c0_54 = arith.constant 0 : index
    %64 = vector.load %arg11[%c0_52, %c0_53, %c0_54] : memref<1x16x128xf32, #tpu.memory_space<vmem>>, vector<1x16x128xf32>
    %65 = vector.shape_cast %64 : vector<1x16x128xf32> to vector<16x128xf32>
    %66 = vector.shape_cast %63 : vector<16x128xf32> to vector<1x16x128xf32>
    tpu.vector_store %arg11[%c0_52, %c0_53, %c0_54], %66 {strides = array<i32>} : memref<1x16x128xf32, #tpu.memory_space<vmem>>, vector<1x16x128xf32>,
    return
  }
  func.func @transform_0(%arg0: i32) -> (i32, i32, i32) {
    %c0_i32 = arith.constant 0 : i32
    %c0_i32_0 = arith.constant 0 : i32
    %c0_i32_1 = arith.constant 0 : i32
    return %arg0, %c0_i32, %c0_i32_0 : i32, i32, i32
  }
  func.func @transform_1(%arg0: i32) -> (i32, i32, i32) {
    %c0_i32 = arith.constant 0 : i32
    %c0_i32_0 = arith.constant 0 : i32
    %c0_i32_1 = arith.constant 0 : i32
    %c0_i32_2 = arith.constant 0 : i32
    return %c0_i32, %c0_i32_0, %c0_i32_1 : i32, i32, i32
  }
  func.func @transform_2(%arg0: i32) -> (i32, i32) {
    %c0_i32 = arith.constant 0 : i32
    %c0_i32_0 = arith.constant 0 : i32
    %c0_i32_1 = arith.constant 0 : i32
    return %c0_i32, %c0_i32_0 : i32, i32
  }
  func.func @transform_3(%arg0: i32) -> (i32, i32) {
    %c0_i32 = arith.constant 0 : i32
    %c0_i32_0 = arith.constant 0 : i32
    %c0_i32_1 = arith.constant 0 : i32
    return %c0_i32, %c0_i32_0 : i32, i32
  }
  func.func @transform_4(%arg0: i32) -> (i32, i32, i32) {
    %c0_i32 = arith.constant 0 : i32
    %c0_i32_0 = arith.constant 0 : i32
    %c0_i32_1 = arith.constant 0 : i32
    %c0_i32_2 = arith.constant 0 : i32
    return %c0_i32, %c0_i32_0, %c0_i32_1 : i32, i32, i32
  }
  func.func @transform_5(%arg0: i32) -> (i32, i32) {
    %c0_i32 = arith.constant 0 : i32
    %c0_i32_0 = arith.constant 0 : i32
    %c0_i32_1 = arith.constant 0 : i32
    return %c0_i32, %c0_i32_0 : i32, i32
  }
  func.func @transform_6(%arg0: i32) -> (i32, i32) {
    %c0_i32 = arith.constant 0 : i32
    %c0_i32_0 = arith.constant 0 : i32
    %c0_i32_1 = arith.constant 0 : i32
    return %c0_i32, %c0_i32_0 : i32, i32
  }
  func.func @transform_7(%arg0: i32) -> (i32, i32) {
    %c0_i32 = arith.constant 0 : i32
    %c0_i32_0 = arith.constant 0 : i32
    %c0_i32_1 = arith.constant 0 : i32
    return %c0_i32, %c0_i32_0 : i32, i32
  }
  func.func @transform_8(%arg0: i32) -> (i32, i32) {
    %c0_i32 = arith.constant 0 : i32
    %c0_i32_0 = arith.constant 0 : i32
    %c0_i32_1 = arith.constant 0 : i32
    return %c0_i32, %c0_i32_0 : i32, i32
  }
  func.func @transform_9(%arg0: i32) -> (i32, i32) {
    %c0_i32 = arith.constant 0 : i32
    %c0_i32_0 = arith.constant 0 : i32
    %c0_i32_1 = arith.constant 0 : i32
    return %c0_i32, %c0_i32_0 : i32, i32
  }
  func.func @transform_10(%arg0: i32) -> (i32, i32, i32) {
    %c0_i32 = arith.constant 0 : i32
    %c0_i32_0 = arith.constant 0 : i32
    %c0_i32_1 = arith.constant 0 : i32
    return %arg0, %c0_i32, %c0_i32_0 : i32, i32, i32
  }
}

</mosaic_0001>

<llo_original>
// kernel: tpu_custom_call.1
$region0: #{tpu_custom_call.1}
  #allocation0 [shape = 'u32[]', space=smem, size = 0x4, offset = 0x4, fixed_abs, tag = 'smem constant byte address 0x4 - core index']
  #allocation1 [shape = 'u32[144,128]{1,0:T(1,128)}', space=vmem, size = 0x12000, scoped, tag = 'internal scratch']
  %s0 = inlined_call_operand.vmem [shape: f32[2,18,72], index: 0, kind: input, shape index: {}]
  %s1 = inlined_call_operand.hbm [shape: f32[3,72,144], index: 1, kind: input, shape index: {}]
  %s2 = inlined_call_operand.vmem [shape: f32[1,144], index: 2, kind: input, shape index: {}]
  %s3 = inlined_call_operand.vmem [shape: f32[1,144], index: 3, kind: input, shape index: {}]
  %s4 = inlined_call_operand.hbm [shape: f32[3,144,128], index: 4, kind: input, shape index: {}]
  %s5 = inlined_call_operand.vmem [shape: f32[1,128], index: 5, kind: input, shape index: {}]
  %s6 = inlined_call_operand.vmem [shape: f32[1,128], index: 6, kind: input, shape index: {}]
  %s7 = inlined_call_operand.vmem [shape: f32[72,128], index: 7, kind: input, shape index: {}]
  %s8 = inlined_call_operand.vmem [shape: f32[1,128], index: 8, kind: input, shape index: {}]
  %s9 = inlined_call_operand.vmem [shape: f32[1,128], index: 9, kind: input, shape index: {}]
  %s10 = inlined_call_operand.hbm [shape: f32[2,16,128], index: 10, kind: output, shape index: {}]
  %s11 = sld [smem:[#allocation0]]
  $region81: #{tpu_custom_call.1} parent=0
    _
  %s13 = ssub.s32 1, %s11
  %s14 = scalar_select 0, %s13, %s11
  $region1: #{tpu_custom_call.1} parent=0
    #allocation2 [shape = 'u8[221184]{0}', space=vmem, size = 0x36000, scoped, tag = 'input window, operand 1, single buffered']
    #allocation3 [shape = 's32[2]{0}', space=sflag, size = 0x8, scoped, tag = 'scoped memory for tpu_custom_call.1']
    #allocation4 [shape = 's32[2]{0}', space=sflag, size = 0x8, scoped, tag = 'scoped memory for tpu_custom_call.1']
    #allocation5 [shape = 'u8[221184]{0}', space=vmem, size = 0x36000, scoped, tag = 'input window, operand 4, single buffered']
    #allocation6 [shape = 's32[1]{0}', space=sflag, size = 0x4, scoped, tag = 'scoped memory for tpu_custom_call.1']
    #allocation7 [shape = 'u8[16384]{0}', space=vmem, size = 0x4000, scoped, tag = 'output window, operand 0']
    %15 = vsyncpa [#allocation3], 0
    %16 = vsyncpa [#allocation6], 0
    %17 = vsyncpa [#allocation4], 0
    %s18 = scalar_lea.sflag [#allocation4], 1
    %19 = vsyncpa %s18, 0
    loop: start=0, step=1, limit=4
    $region2: #{tpu_custom_call.1} parent=1 // loop_pre_header
      _
    $region3: #{tpu_custom_call.1} parent=1 // loop_header
      %s21 = sphi 0, %s25
      %p22 = scmp.ge.s32.totalorder %s21, 4
      %s31 = sphi 0, %s33
      %s34 = sphi 0, %s31
      %s35 = sphi 0, %s34
      %s51 = sphi 0, %s35
      %s55 = sphi 0, %s55
      %s57 = sphi 0, %s55
      %s58 = sphi 0, %s57
      %s72 = sphi 0, %s58
      %s76 = sphi 0, %s76
      %s78 = sphi 0, %s76
      %s79 = sphi 0, %s78
      %s93 = sphi 0, %s79
      %s97 = sphi 0, %s97
      %s99 = sphi 0, %s97
      %s100 = sphi 0, %s99
      %s114 = sphi 0, %s100
      %s118 = sphi 0, %s118
      %s120 = sphi 0, %s118
      %s121 = sphi 0, %s120
      %s135 = sphi 0, %s121
      %s139 = sphi 0, %s139
      %s141 = sphi 0, %s139
      %s142 = sphi 0, %s141
      %s156 = sphi 0, %s142
      %s160 = sphi 0, %s160
      %s162 = sphi 0, %s160
      %s163 = sphi 0, %s162
      %s177 = sphi 0, %s163
      %s181 = sphi 0, %s181
      %s183 = sphi 0, %s181
      %s184 = sphi 0, %s183
      %s198 = sphi 0, %s184
      %s202 = sphi 0, %s202
      %s204 = sphi 0, %s202
      %s205 = sphi 0, %s204
      %s219 = sphi 0, %s205
      %s223 = sphi 0, %s223
      %s225 = sphi 0, %s223
      %s226 = sphi 0, %s225
      %s240 = sphi 0, %s226
      %s246 = sphi 0, %s248
      %s249 = sphi 0, %s246
      %s250 = sphi 0, %s249
      %s266 = sphi 0, %s250
    $region4: #{tpu_custom_call.1} parent=1 // loop_header_branch
      %24 = sbr.rel (%p22) target = $region8
    $region5: #{tpu_custom_call.1} parent=1 // loop_body
      %s26 = ssub.s32 %s21, 1
      %s27 = ssub.s32 %s21, 2
      %s28 = sadd.s32 %s21, 1
      %s29 = ssub.s32 %s21, %s28
      %p30 = scmp.eq.s32.totalorder %s29, 0
      %s32 = sadd.s32 %s31, 1
      %s33 = scalar_select %p30, %s31, %s32
      %p36 = pneg %p30
      %p37 = scmp.eq.s32.totalorder %s21, 1
      %p38 = por %p36, %p37
      %p39 = scmp.ne.s32.totalorder %s31, %s34
      %p40 = scmp.eq.s32.totalorder %s21, 0
      %p41 = por %p39, %p40
      %p42 = scmp.ne.s32.totalorder %s31, %s34
      %p43 = scmp.eq.s32.totalorder %s26, 1
      %p44 = por %p42, %p43
      %p45 = scmp.ne.s32.totalorder %s34, %s35
      %p46 = scmp.eq.s32.totalorder %s26, 0
      %p47 = por %p45, %p46
      %p48 = scmp.ne.s32.totalorder %s34, %s35
      %p49 = scmp.eq.s32.totalorder %s27, 1
      %p50 = por %p48, %p49
      %p52 = scmp.ne.s32.totalorder %s35, %s51
      %p53 = scmp.eq.s32.totalorder %s27, 0
      %p54 = por %p52, %p53
      %s56 = sadd.s32 %s55, 1
      %p59 = scmp.eq.s32.totalorder %s21, 1
      %p60 = scmp.ne.s32.totalorder %s55, %s57
      %p61 = scmp.eq.s32.totalorder %s21, 0
      %p62 = por %p60, %p61
      %p63 = scmp.ne.s32.totalorder %s55, %s57
      %p64 = scmp.eq.s32.totalorder %s26, 1
      %p65 = por %p63, %p64
      %p66 = scmp.ne.s32.totalorder %s57, %s58
      %p67 = scmp.eq.s32.totalorder %s26, 0
      %p68 = por %p66, %p67
      %p69 = scmp.ne.s32.totalorder %s57, %s58
      %p70 = scmp.eq.s32.totalorder %s27, 1
      %p71 = por %p69, %p70
      %p73 = scmp.ne.s32.totalorder %s58, %s72
      %p74 = scmp.eq.s32.totalorder %s27, 0
      %p75 = por %p73, %p74
      %s77 = sadd.s32 %s76, 1
      %p80 = scmp.eq.s32.totalorder %s21, 1
      %p81 = scmp.ne.s32.totalorder %s76, %s78
      %p82 = scmp.eq.s32.totalorder %s21, 0
      %p83 = por %p81, %p82
      %p84 = scmp.ne.s32.totalorder %s76, %s78
      %p85 = scmp.eq.s32.totalorder %s26, 1
      %p86 = por %p84, %p85
      %p87 = scmp.ne.s32.totalorder %s78, %s79
      %p88 = scmp.eq.s32.totalorder %s26, 0
      %p89 = por %p87, %p88
      %p90 = scmp.ne.s32.totalorder %s78, %s79
      %p91 = scmp.eq.s32.totalorder %s27, 1
      %p92 = por %p90, %p91
      %p94 = scmp.ne.s32.totalorder %s79, %s93
      %p95 = scmp.eq.s32.totalorder %s27, 0
      %p96 = por %p94, %p95
      %s98 = sadd.s32 %s97, 1
      %p101 = scmp.eq.s32.totalorder %s21, 1
      %p102 = scmp.ne.s32.totalorder %s97, %s99
      %p103 = scmp.eq.s32.totalorder %s21, 0
      %p104 = por %p102, %p103
      %p105 = scmp.ne.s32.totalorder %s97, %s99
      %p106 = scmp.eq.s32.totalorder %s26, 1
      %p107 = por %p105, %p106
      %p108 = scmp.ne.s32.totalorder %s99, %s100
      %p109 = scmp.eq.s32.totalorder %s26, 0
      %p110 = por %p108, %p109
      %p111 = scmp.ne.s32.totalorder %s99, %s100
      %p112 = scmp.eq.s32.totalorder %s27, 1
      %p113 = por %p111, %p112
      %p115 = scmp.ne.s32.totalorder %s100, %s114
      %p116 = scmp.eq.s32.totalorder %s27, 0
      %p117 = por %p115, %p116
      %s119 = sadd.s32 %s118, 1
      %p122 = scmp.eq.s32.totalorder %s21, 1
      %p123 = scmp.ne.s32.totalorder %s118, %s120
      %p124 = scmp.eq.s32.totalorder %s21, 0
      %p125 = por %p123, %p124
      %p126 = scmp.ne.s32.totalorder %s118, %s120
      %p127 = scmp.eq.s32.totalorder %s26, 1
      %p128 = por %p126, %p127
      %p129 = scmp.ne.s32.totalorder %s120, %s121
      %p130 = scmp.eq.s32.totalorder %s26, 0
      %p131 = por %p129, %p130
      %p132 = scmp.ne.s32.totalorder %s120, %s121
      %p133 = scmp.eq.s32.totalorder %s27, 1
      %p134 = por %p132, %p133
      %p136 = scmp.ne.s32.totalorder %s121, %s135
      %p137 = scmp.eq.s32.totalorder %s27, 0
      %p138 = por %p136, %p137
      %s140 = sadd.s32 %s139, 1
      %p143 = scmp.eq.s32.totalorder %s21, 1
      %p144 = scmp.ne.s32.totalorder %s139, %s141
      %p145 = scmp.eq.s32.totalorder %s21, 0
      %p146 = por %p144, %p145
      %p147 = scmp.ne.s32.totalorder %s139, %s141
      %p148 = scmp.eq.s32.totalorder %s26, 1
      %p149 = por %p147, %p148
      %p150 = scmp.ne.s32.totalorder %s141, %s142
      %p151 = scmp.eq.s32.totalorder %s26, 0
      %p152 = por %p150, %p151
      %p153 = scmp.ne.s32.totalorder %s141, %s142
      %p154 = scmp.eq.s32.totalorder %s27, 1
      %p155 = por %p153, %p154
      %p157 = scmp.ne.s32.totalorder %s142, %s156
      %p158 = scmp.eq.s32.totalorder %s27, 0
      %p159 = por %p157, %p158
      %s161 = sadd.s32 %s160, 1
      %p164 = scmp.eq.s32.totalorder %s21, 1
      %p165 = scmp.ne.s32.totalorder %s160, %s162
      %p166 = scmp.eq.s32.totalorder %s21, 0
      %p167 = por %p165, %p166
      %p168 = scmp.ne.s32.totalorder %s160, %s162
      %p169 = scmp.eq.s32.totalorder %s26, 1
      %p170 = por %p168, %p169
      %p171 = scmp.ne.s32.totalorder %s162, %s163
      %p172 = scmp.eq.s32.totalorder %s26, 0
      %p173 = por %p171, %p172
      %p174 = scmp.ne.s32.totalorder %s162, %s163
      %p175 = scmp.eq.s32.totalorder %s27, 1
      %p176 = por %p174, %p175
      %p178 = scmp.ne.s32.totalorder %s163, %s177
      %p179 = scmp.eq.s32.totalorder %s27, 0
      %p180 = por %p178, %p179
      %s182 = sadd.s32 %s181, 1
      %p185 = scmp.eq.s32.totalorder %s21, 1
      %p186 = scmp.ne.s32.totalorder %s181, %s183
      %p187 = scmp.eq.s32.totalorder %s21, 0
      %p188 = por %p186, %p187
      %p189 = scmp.ne.s32.totalorder %s181, %s183
      %p190 = scmp.eq.s32.totalorder %s26, 1
      %p191 = por %p189, %p190
      %p192 = scmp.ne.s32.totalorder %s183, %s184
      %p193 = scmp.eq.s32.totalorder %s26, 0
      %p194 = por %p192, %p193
      %p195 = scmp.ne.s32.totalorder %s183, %s184
      %p196 = scmp.eq.s32.totalorder %s27, 1
      %p197 = por %p195, %p196
      %p199 = scmp.ne.s32.totalorder %s184, %s198
      %p200 = scmp.eq.s32.totalorder %s27, 0
      %p201 = por %p199, %p200
      %s203 = sadd.s32 %s202, 1
      %p206 = scmp.eq.s32.totalorder %s21, 1
      %p207 = scmp.ne.s32.totalorder %s202, %s204
      %p208 = scmp.eq.s32.totalorder %s21, 0
      %p209 = por %p207, %p208
      %p210 = scmp.ne.s32.totalorder %s202, %s204
      %p211 = scmp.eq.s32.totalorder %s26, 1
      %p212 = por %p210, %p211
      %p213 = scmp.ne.s32.totalorder %s204, %s205
      %p214 = scmp.eq.s32.totalorder %s26, 0
      %p215 = por %p213, %p214
      %p216 = scmp.ne.s32.totalorder %s204, %s205
      %p217 = scmp.eq.s32.totalorder %s27, 1
      %p218 = por %p216, %p217
      %p220 = scmp.ne.s32.totalorder %s205, %s219
      %p221 = scmp.eq.s32.totalorder %s27, 0
      %p222 = por %p220, %p221
      %s224 = sadd.s32 %s223, 1
      %p227 = scmp.eq.s32.totalorder %s21, 1
      %p228 = scmp.ne.s32.totalorder %s223, %s225
      %p229 = scmp.eq.s32.totalorder %s21, 0
      %p230 = por %p228, %p229
      %p231 = scmp.ne.s32.totalorder %s223, %s225
      %p232 = scmp.eq.s32.totalorder %s26, 1
      %p233 = por %p231, %p232
      %p234 = scmp.ne.s32.totalorder %s225, %s226
      %p235 = scmp.eq.s32.totalorder %s26, 0
      %p236 = por %p234, %p235
      %p237 = scmp.ne.s32.totalorder %s225, %s226
      %p238 = scmp.eq.s32.totalorder %s27, 1
      %p239 = por %p237, %p238
      %p241 = scmp.ne.s32.totalorder %s226, %s240
      %p242 = scmp.eq.s32.totalorder %s27, 0
      %p243 = por %p241, %p242
      %s244 = ssub.s32 %s21, %s28
      %p245 = scmp.eq.s32.totalorder %s244, 0
      %s247 = sadd.s32 %s246, 1
      %s248 = scalar_select %p245, %s246, %s247
      %p251 = pneg %p245
      %p252 = scmp.eq.s32.totalorder %s21, 1
      %p253 = por %p251, %p252
      %p254 = scmp.ne.s32.totalorder %s246, %s249
      %p255 = scmp.eq.s32.totalorder %s21, 0
      %p256 = por %p254, %p255
      %p257 = scmp.ne.s32.totalorder %s246, %s249
      %p258 = scmp.eq.s32.totalorder %s26, 1
      %p259 = por %p257, %p258
      %p260 = scmp.ne.s32.totalorder %s249, %s250
      %p261 = scmp.eq.s32.totalorder %s26, 0
      %p262 = por %p260, %p261
      %p263 = scmp.ne.s32.totalorder %s249, %s250
      %p264 = scmp.eq.s32.totalorder %s27, 1
      %p265 = por %p263, %p264
      %p267 = scmp.ne.s32.totalorder %s250, %s266
      %p268 = scmp.eq.s32.totalorder %s27, 0
      %p269 = por %p267, %p268
      %p270 = scmp.le.s32.totalorder 1, %s21
      %p271 = scmp.lt.s32.totalorder %s21, 3
      %p272 = pnand %p270, %p271
      %p273 = pneg %p272
      // Predicated region
      $region9: #{tpu_custom_call.1} parent=5 // pred_check
        _
      $region10: #{tpu_custom_call.1} parent=5 // pred_check_branch
        %275 = sbr.rel (%p272) target = $region12
      $region11: #{tpu_custom_call.1} parent=5 // pred_region
        %s276 = ssub.s32 %s21, 1
        // Predicated region
        $region13: #{tpu_custom_call.1} parent=11 // pred_check
          %p277 = pneg %p68
        $region14: #{tpu_custom_call.1} parent=11 // pred_check_branch
          %279 = sbr.rel (%p277) target = $region16
        $region15: #{tpu_custom_call.1} parent=11 // pred_region
          %s281 = ssub.s32 6912, 6912
          %282 = vsyncadd [#allocation3], %s281
          %s283 = sshll.u32 [#allocation2], 4
          %s284 = int_to_ptr.vmem [resolvable:$true] %s283
          %289 = dma.hbm_to_vmem [thread:$0]  %s1, 6912, %s284, [#allocation3], 256, 256, 16
        $region16: #{tpu_custom_call.1} parent=11 // pred_fallthru
          _
        // Predicated region
        $region17: #{tpu_custom_call.1} parent=11 // pred_check
          %p290 = pneg %p89
        $region18: #{tpu_custom_call.1} parent=11 // pred_check_branch
          %292 = sbr.rel (%p290) target = $region20
        $region19: #{tpu_custom_call.1} parent=11 // pred_region
          _
        $region20: #{tpu_custom_call.1} parent=11 // pred_fallthru
          _
        // Predicated region
        $region21: #{tpu_custom_call.1} parent=11 // pred_check
          %p293 = pneg %p110
        $region22: #{tpu_custom_call.1} parent=11 // pred_check_branch
          %295 = sbr.rel (%p293) target = $region24
        $region23: #{tpu_custom_call.1} parent=11 // pred_region
          _
        $region24: #{tpu_custom_call.1} parent=11 // pred_fallthru
          _
        // Predicated region
        $region25: #{tpu_custom_call.1} parent=11 // pred_check
          %p296 = pneg %p131
        $region26: #{tpu_custom_call.1} parent=11 // pred_check_branch
          %298 = sbr.rel (%p296) target = $region28
        $region27: #{tpu_custom_call.1} parent=11 // pred_region
          %s300 = ssub.s32 6912, 6912
          %301 = vsyncadd [#allocation6], %s300
          %s302 = sshll.u32 [#allocation5], 4
          %s303 = int_to_ptr.vmem [resolvable:$true] %s302
          %308 = dma.hbm_to_vmem [thread:$0]  %s4, 6912, %s303, [#allocation6], 128, 128, 8
        $region28: #{tpu_custom_call.1} parent=11 // pred_fallthru
          _
        // Predicated region
        $region29: #{tpu_custom_call.1} parent=11 // pred_check
          %p309 = pneg %p152
        $region30: #{tpu_custom_call.1} parent=11 // pred_check_branch
          %311 = sbr.rel (%p309) target = $region32
        $region31: #{tpu_custom_call.1} parent=11 // pred_region
          _
        $region32: #{tpu_custom_call.1} parent=11 // pred_fallthru
          _
        // Predicated region
        $region33: #{tpu_custom_call.1} parent=11 // pred_check
          %p312 = pneg %p173
        $region34: #{tpu_custom_call.1} parent=11 // pred_check_branch
          %314 = sbr.rel (%p312) target = $region36
        $region35: #{tpu_custom_call.1} parent=11 // pred_region
          _
        $region36: #{tpu_custom_call.1} parent=11 // pred_fallthru
          _
        // Predicated region
        $region37: #{tpu_custom_call.1} parent=11 // pred_check
          %p315 = pneg %p194
        $region38: #{tpu_custom_call.1} parent=11 // pred_check_branch
          %317 = sbr.rel (%p315) target = $region40
        $region39: #{tpu_custom_call.1} parent=11 // pred_region
          _
        $region40: #{tpu_custom_call.1} parent=11 // pred_fallthru
          _
        // Predicated region
        $region41: #{tpu_custom_call.1} parent=11 // pred_check
          %p318 = pneg %p215
        $region42: #{tpu_custom_call.1} parent=11 // pred_check_branch
          %320 = sbr.rel (%p318) target = $region44
        $region43: #{tpu_custom_call.1} parent=11 // pred_region
          _
        $region44: #{tpu_custom_call.1} parent=11 // pred_fallthru
          _
        // Predicated region
        $region45: #{tpu_custom_call.1} parent=11 // pred_check
          %p321 = pneg %p236
        $region46: #{tpu_custom_call.1} parent=11 // pred_check_branch
          %323 = sbr.rel (%p321) target = $region48
        $region47: #{tpu_custom_call.1} parent=11 // pred_region
          _
        $region48: #{tpu_custom_call.1} parent=11 // pred_fallthru
          _
      $region12: #{tpu_custom_call.1} parent=5 // pred_fallthru
        _
      %p324 = scmp.lt.s32.totalorder %s21, 2
      // Predicated region
      $region49: #{tpu_custom_call.1} parent=5 // pred_check
        %p325 = pneg %p324
      $region50: #{tpu_custom_call.1} parent=5 // pred_check_branch
        %327 = sbr.rel (%p325) target = $region52
      $region51: #{tpu_custom_call.1} parent=5 // pred_region
        // Predicated region
        $region53: #{tpu_custom_call.1} parent=51 // pred_check
          %p328 = pneg %p41
        $region54: #{tpu_custom_call.1} parent=51 // pred_check_branch
          %330 = sbr.rel (%p328) target = $region56
        $region55: #{tpu_custom_call.1} parent=51 // pred_region
          %p331 = scmp.lt.s32.totalorder %s21, 1
          %s332 = scalar_select %p331, %s21, 1
          %s333 = smul.addr %s332, 3
          %s334 = smul.addr %s333, 8
          %s335 = scalar_lea.vmem %s0, %s334
        $region56: #{tpu_custom_call.1} parent=51 // pred_fallthru
          _
      $region52: #{tpu_custom_call.1} parent=5 // pred_fallthru
        _
      %p336 = scmp.le.s32.totalorder 1, %s21
      %p337 = scmp.lt.s32.totalorder %s21, 3
      %p338 = pnand %p336, %p337
      %p339 = pneg %p338
      // Predicated region
      $region57: #{tpu_custom_call.1} parent=5 // pred_check
        _
      $region58: #{tpu_custom_call.1} parent=5 // pred_check_branch
        %341 = sbr.rel (%p338) target = $region60
      $region59: #{tpu_custom_call.1} parent=5 // pred_region
        %s342 = ssub.s32 %s21, 1
        // Predicated region
        $region61: #{tpu_custom_call.1} parent=59 // pred_check
          %p343 = pneg %p68
        $region62: #{tpu_custom_call.1} parent=59 // pred_check_branch
          %345 = sbr.rel (%p343) target = $region64
        $region63: #{tpu_custom_call.1} parent=59 // pred_region
          %346 = dma.done [#allocation3], 6912
        $region64: #{tpu_custom_call.1} parent=59 // pred_fallthru
          _
        // Predicated region
        $region65: #{tpu_custom_call.1} parent=59 // pred_check
          %p347 = pneg %p131
        $region66: #{tpu_custom_call.1} parent=59 // pred_check_branch
          %349 = sbr.rel (%p347) target = $region68
        $region67: #{tpu_custom_call.1} parent=59 // pred_region
          %350 = dma.done [#allocation6], 6912
        $region68: #{tpu_custom_call.1} parent=59 // pred_fallthru
          _
        %p351 = scmp.lt.s32.totalorder %s26, 1
        %s352 = scalar_select %p351, %s26, 1
        %s353 = smul.addr %s352, 3
        %s354 = smul.addr %s353, 8
        %s355 = scalar_lea.vmem %s0, %s354
        %p356 = pneg %p47
        %p357 = pneg %p44
        %p358 = pneg %p68
        %p359 = pneg %p65
        %p360 = pneg %p89
        %p361 = pneg %p86
        %p362 = pneg %p110
        %p363 = pneg %p107
        %p364 = pneg %p131
        %p365 = pneg %p128
        %p366 = pneg %p152
        %p367 = pneg %p149
        %p368 = pneg %p173
        %p369 = pneg %p170
        %p370 = pneg %p194
        %p371 = pneg %p191
        %p372 = pneg %p215
        %p373 = pneg %p212
        %p374 = pneg %p236
        %p375 = pneg %p233
        %p376 = pneg %p262
        %p377 = pneg %p259
        %s378 = sand.u32 %s249, 1
        %s379 = scalar_lea.sflag [#allocation4], %s378
        %s380 = sand.u32 %s249, 1
        %s381 = smul.addr %s380, 16
        %s382 = scalar_lea.vmem [#allocation7], %s381
        %p383 = scmp.lt.s32.totalorder %s26, 1
        %s384 = scalar_select %p383, %s26, 1
        %s385 = smul.addr %s384, 3
        %s386 = smul.addr %s385, 8
        %s387 = scalar_lea.vmem %s0, %s386
        %v388 = vld [vmem:[%s387] sm:$0xff]
        %v389 = vld [vmem:[%s387 + $0x8] sm:$0xff]
        %v390 = vld [vmem:[#allocation2] sm:$0xff]
        %v391 = vld [vmem:[#allocation2 + $0x8] sm:$0xff]
        %v392 = vld [vmem:[#allocation2 + $0x10] sm:$0xff]
        %v393 = vld [vmem:[#allocation2 + $0x18] sm:$0xff]
        %v394 = vld [vmem:[#allocation2 + $0x20] sm:$0xff]
        %v395 = vld [vmem:[#allocation2 + $0x28] sm:$0xff]
        %v396 = vld [vmem:[#allocation2 + $0x30] sm:$0xff]
        %v397 = vld [vmem:[#allocation2 + $0x38] sm:$0xff]
        %v398 = vld [vmem:[#allocation2 + $0x40] sm:$0xff]
        %v399 = vld [vmem:[#allocation2 + $0x48] sm:$0xff]
        %v400 = vld [vmem:[#allocation2 + $0x50] sm:$0xff]
        %v401 = vld [vmem:[#allocation2 + $0x58] sm:$0xff]
        %v402 = vld [vmem:[#allocation2 + $0x60] sm:$0xff]
        %v403 = vld [vmem:[#allocation2 + $0x68] sm:$0xff]
        %v404 = vld [vmem:[#allocation2 + $0x70] sm:$0xff]
        %v405 = vld [vmem:[#allocation2 + $0x78] sm:$0xff]
        %v406 = vld [vmem:[#allocation2 + $0x80] sm:$0xff]
        %v407 = vld [vmem:[#allocation2 + $0x88] sm:$0xff]
        %v408 = vld [vmem:[%s387 + $0x1] sm:$0xff]
        %v409 = vld [vmem:[%s387 + $0x9] sm:$0xff]
        %s410 = scalar_lea.vmem [#allocation2], 144
        %v411 = vld [vmem:[%s410] sm:$0xff]
        %v412 = vld [vmem:[%s410 + $0x8] sm:$0xff]
        %v413 = vld [vmem:[%s410 + $0x10] sm:$0xff]
        %v414 = vld [vmem:[%s410 + $0x18] sm:$0xff]
        %v415 = vld [vmem:[%s410 + $0x20] sm:$0xff]
        %v416 = vld [vmem:[%s410 + $0x28] sm:$0xff]
        %v417 = vld [vmem:[%s410 + $0x30] sm:$0xff]
        %v418 = vld [vmem:[%s410 + $0x38] sm:$0xff]
        %v419 = vld [vmem:[%s410 + $0x40] sm:$0xff]
        %v420 = vld [vmem:[%s410 + $0x48] sm:$0xff]
        %v421 = vld [vmem:[%s410 + $0x50] sm:$0xff]
        %v422 = vld [vmem:[%s410 + $0x58] sm:$0xff]
        %v423 = vld [vmem:[%s410 + $0x60] sm:$0xff]
        %v424 = vld [vmem:[%s410 + $0x68] sm:$0xff]
        %v425 = vld [vmem:[%s410 + $0x70] sm:$0xff]
        %v426 = vld [vmem:[%s410 + $0x78] sm:$0xff]
        %v427 = vld [vmem:[%s410 + $0x80] sm:$0xff]
        %v428 = vld [vmem:[%s410 + $0x88] sm:$0xff]
        %vm429 = vcmask 588800
        %v431 = vsel %vm429, %v408, 0
        %v434 = vsel %vm429, %v409, 0
        %436 = vmatprep.subr.mxu0 %v412
        %437 = vmatpush1.msra.mxu0 %v411
        %438 = vmatprep.subr.mxu0 %v414
        %439 = vmatpush1.msra.mxu0 %v413
        %440 = vmatprep.subr.mxu0 %v416
        %441 = vmatpush1.msra.mxu0 %v415
        %442 = vmatprep.subr.mxu0 %v418
        %443 = vmatpush1.msra.mxu0 %v417
        %444 = vmatprep.subr.mxu0 %v420
        %445 = vmatpush1.msra.mxu0 %v419
        %446 = vmatprep.subr.mxu0 %v422
        %447 = vmatpush1.msra.mxu0 %v421
        %448 = vmatprep.subr.mxu0 %v424
        %449 = vmatpush1.msra.mxu0 %v423
        %450 = vmatprep.subr.mxu0 %v426
        %451 = vmatpush1.msra.mxu0 %v425
        %452 = vmatprep.subr.mxu0 %v428
        %453 = vmatpush1.msra.mxu0 %v427
        %454 = vmatprep.subr.mxu0 0.0
        %455 = vmatpush1.msra.mxu0 0.0
        %456 = vmatprep.subr.mxu0 0.0
        %457 = vmatpush1.msra.mxu0 0.0
        %458 = vmatprep.subr.mxu0 0.0
        %459 = vmatpush1.msra.mxu0 0.0
        %460 = vmatprep.subr.mxu0 0.0
        %461 = vmatpush1.msra.mxu0 0.0
        %462 = vmatprep.subr.mxu0 0.0
        %463 = vmatpush1.msra.mxu0 0.0
        %464 = vmatprep.subr.mxu0 0.0
        %465 = vmatpush1.msra.mxu0 0.0
        %466 = vmatprep.subr.mxu0 0.0
        %467 = vmatpush1.msra.mxu0 0.0
        %468 = vmatprep.subr.mxu0 0.0
        %469 = vmatpush1.msra.mxu0 0.0
        %470 = vmatprep.subr.mxu0 0.0
        %471 = vmatpush1.msra.mxu0 0.0
        %472 = vmatprep.subr.mxu0 0.0
        %473 = vmatpush1.msra.mxu0 0.0
        %474 = vmatprep.subr.mxu0 0.0
        %475 = vmatpush1.msra.mxu0 0.0
        %476 = vmatprep.subr.mxu0 0.0
        %477 = vmatpush1.msra.mxu0 0.0
        %478 = vmatprep.subr.mxu0 0.0
        %479 = vmatpush1.msra.mxu0 0.0
        %480 = vmatprep.subr.mxu0 0.0
        %481 = vmatpush1.msra.mxu0 0.0
        %482 = vmatprep.subr.mxu0 0.0
        %483 = vmatpush1.msra.mxu0 0.0
        %484 = vmatprep.subr.mxu0 0.0
        %485 = vmatpush1.msra.mxu0 0.0
        %486 = vmatprep.subr.mxu0 0.0
        %487 = vmatpush1.msra.mxu0 0.0
        %488 = vmatprep.subr.mxu0 0.0
        %489 = vmatpush1.msra.mxu0 0.0
        %490 = vmatprep.subr.mxu0 0.0
        %491 = vmatpush1.msra.mxu0 0.0
        %492 = vmatprep.subr.mxu0 0.0
        %493 = vmatpush1.msra.mxu0 0.0
        %494 = vmatprep.subr.mxu0 0.0
        %495 = vmatpush1.msra.mxu0 0.0
        %496 = vmatprep.subr.mxu0 0.0
        %497 = vmatpush1.msra.mxu0 0.0
        %498 = vmatprep.subr.mxu0 0.0
        %499 = vmatpush1.msra.mxu0 0.0
        %500 = vmatprep.mubr.f32.mxu0 0.0
        %501 = vmatmul.mubr.f32.gmra.mrb[0].mxu0 %v431
        %v502 = vpop.f32.mrb[0].mxu0
        %v503 = vadd.f32 0.0, %v502
        %v504 = vpop.f32.mrb[0].mxu0
        %v505 = vadd.f32 0.0, %v504
        %506 = vmatprep.mubr.f32.mxu0 0.0
        %507 = vmatmul.mubr.f32.gmra.mrb[0].mxu0 %v434
        %v508 = vpop.f32.mrb[0].mxu0
        %v509 = vadd.f32 0.0, %v508
        %v510 = vpop.f32.mrb[0].mxu0
        %v511 = vadd.f32 0.0, %v510
        %512 = vdwg.mxu0
        %v514 = vsel %vm429, %v388, 0
        %v517 = vsel %vm429, %v389, 0
        %519 = vmatprep.subr.mxu0 %v391
        %520 = vmatpush1.msra.mxu0 %v390
        %521 = vmatprep.subr.mxu0 %v393
        %522 = vmatpush1.msra.mxu0 %v392
        %523 = vmatprep.subr.mxu0 %v395
        %524 = vmatpush1.msra.mxu0 %v394
        %525 = vmatprep.subr.mxu0 %v397
        %526 = vmatpush1.msra.mxu0 %v396
        %527 = vmatprep.subr.mxu0 %v399
        %528 = vmatpush1.msra.mxu0 %v398
        %529 = vmatprep.subr.mxu0 %v401
        %530 = vmatpush1.msra.mxu0 %v400
        %531 = vmatprep.subr.mxu0 %v403
        %532 = vmatpush1.msra.mxu0 %v402
        %533 = vmatprep.subr.mxu0 %v405
        %534 = vmatpush1.msra.mxu0 %v404
        %535 = vmatprep.subr.mxu0 %v407
        %536 = vmatpush1.msra.mxu0 %v406
        %537 = vmatprep.subr.mxu0 0.0
        %538 = vmatpush1.msra.mxu0 0.0
        %539 = vmatprep.subr.mxu0 0.0
        %540 = vmatpush1.msra.mxu0 0.0
        %541 = vmatprep.subr.mxu0 0.0
        %542 = vmatpush1.msra.mxu0 0.0
        %543 = vmatprep.subr.mxu0 0.0
        %544 = vmatpush1.msra.mxu0 0.0
        %545 = vmatprep.subr.mxu0 0.0
        %546 = vmatpush1.msra.mxu0 0.0
        %547 = vmatprep.subr.mxu0 0.0
        %548 = vmatpush1.msra.mxu0 0.0
        %549 = vmatprep.subr.mxu0 0.0
        %550 = vmatpush1.msra.mxu0 0.0
        %551 = vmatprep.subr.mxu0 0.0
        %552 = vmatpush1.msra.mxu0 0.0
        %553 = vmatprep.subr.mxu0 0.0
        %554 = vmatpush1.msra.mxu0 0.0
        %555 = vmatprep.subr.mxu0 0.0
        %556 = vmatpush1.msra.mxu0 0.0
        %557 = vmatprep.subr.mxu0 0.0
        %558 = vmatpush1.msra.mxu0 0.0
        %559 = vmatprep.subr.mxu0 0.0
        %560 = vmatpush1.msra.mxu0 0.0
        %561 = vmatprep.subr.mxu0 0.0
        %562 = vmatpush1.msra.mxu0 0.0
        %563 = vmatprep.subr.mxu0 0.0
        %564 = vmatpush1.msra.mxu0 0.0
        %565 = vmatprep.subr.mxu0 0.0
        %566 = vmatpush1.msra.mxu0 0.0
        %567 = vmatprep.subr.mxu0 0.0
        %568 = vmatpush1.msra.mxu0 0.0
        %569 = vmatprep.subr.mxu0 0.0
        %570 = vmatpush1.msra.mxu0 0.0
        %571 = vmatprep.subr.mxu0 0.0
        %572 = vmatpush1.msra.mxu0 0.0
        %573 = vmatprep.subr.mxu0 0.0
        %574 = vmatpush1.msra.mxu0 0.0
        %575 = vmatprep.subr.mxu0 0.0
        %576 = vmatpush1.msra.mxu0 0.0
        %577 = vmatprep.subr.mxu0 0.0
        %578 = vmatpush1.msra.mxu0 0.0
        %579 = vmatprep.subr.mxu0 0.0
        %580 = vmatpush1.msra.mxu0 0.0
        %581 = vmatprep.subr.mxu0 0.0
        %582 = vmatpush1.msra.mxu0 0.0
        %583 = vmatprep.mubr.f32.mxu0 0.0
        %584 = vmatmul.mubr.f32.gmra.mrb[0].mxu0 %v514
        %v585 = vpop.f32.mrb[0].mxu0
        %v586 = vadd.f32 %v503, %v585
        %v587 = vpop.f32.mrb[0].mxu0
        %v588 = vadd.f32 %v505, %v587
        %589 = vmatprep.mubr.f32.mxu0 0.0
        %590 = vmatmul.mubr.f32.gmra.mrb[0].mxu0 %v517
        %v591 = vpop.f32.mrb[0].mxu0
        %v592 = vadd.f32 %v509, %v591
        %v593 = vpop.f32.mrb[0].mxu0
        %v594 = vadd.f32 %v511, %v593
        %595 = vdwg.mxu0
        %v596 = vld [vmem:[%s387 + $0x2] sm:$0xff]
        %v597 = vld [vmem:[%s387 + $0xa] sm:$0xff]
        %s598 = scalar_lea.vmem [#allocation2], 288
        %v599 = vld [vmem:[%s598] sm:$0xff]
        %v600 = vld [vmem:[%s598 + $0x8] sm:$0xff]
        %v601 = vld [vmem:[%s598 + $0x10] sm:$0xff]
        %v602 = vld [vmem:[%s598 + $0x18] sm:$0xff]
        %v603 = vld [vmem:[%s598 + $0x20] sm:$0xff]
        %v604 = vld [vmem:[%s598 + $0x28] sm:$0xff]
        %v605 = vld [vmem:[%s598 + $0x30] sm:$0xff]
        %v606 = vld [vmem:[%s598 + $0x38] sm:$0xff]
        %v607 = vld [vmem:[%s598 + $0x40] sm:$0xff]
        %v608 = vld [vmem:[%s598 + $0x48] sm:$0xff]
        %v609 = vld [vmem:[%s598 + $0x50] sm:$0xff]
        %v610 = vld [vmem:[%s598 + $0x58] sm:$0xff]
        %v611 = vld [vmem:[%s598 + $0x60] sm:$0xff]
        %v612 = vld [vmem:[%s598 + $0x68] sm:$0xff]
        %v613 = vld [vmem:[%s598 + $0x70] sm:$0xff]
        %v614 = vld [vmem:[%s598 + $0x78] sm:$0xff]
        %v615 = vld [vmem:[%s598 + $0x80] sm:$0xff]
        %v616 = vld [vmem:[%s598 + $0x88] sm:$0xff]
        %v618 = vsel %vm429, %v596, 0
        %v621 = vsel %vm429, %v597, 0
        %623 = vmatprep.subr.mxu0 %v600
        %624 = vmatpush1.msra.mxu0 %v599
        %625 = vmatprep.subr.mxu0 %v602
        %626 = vmatpush1.msra.mxu0 %v601
        %627 = vmatprep.subr.mxu0 %v604
        %628 = vmatpush1.msra.mxu0 %v603
        %629 = vmatprep.subr.mxu0 %v606
        %630 = vmatpush1.msra.mxu0 %v605
        %631 = vmatprep.subr.mxu0 %v608
        %632 = vmatpush1.msra.mxu0 %v607
        %633 = vmatprep.subr.mxu0 %v610
        %634 = vmatpush1.msra.mxu0 %v609
        %635 = vmatprep.subr.mxu0 %v612
        %636 = vmatpush1.msra.mxu0 %v611
        %637 = vmatprep.subr.mxu0 %v614
        %638 = vmatpush1.msra.mxu0 %v613
        %639 = vmatprep.subr.mxu0 %v616
        %640 = vmatpush1.msra.mxu0 %v615
        %641 = vmatprep.subr.mxu0 0.0
        %642 = vmatpush1.msra.mxu0 0.0
        %643 = vmatprep.subr.mxu0 0.0
        %644 = vmatpush1.msra.mxu0 0.0
        %645 = vmatprep.subr.mxu0 0.0
        %646 = vmatpush1.msra.mxu0 0.0
        %647 = vmatprep.subr.mxu0 0.0
        %648 = vmatpush1.msra.mxu0 0.0
        %649 = vmatprep.subr.mxu0 0.0
        %650 = vmatpush1.msra.mxu0 0.0
        %651 = vmatprep.subr.mxu0 0.0
        %652 = vmatpush1.msra.mxu0 0.0
        %653 = vmatprep.subr.mxu0 0.0
        %654 = vmatpush1.msra.mxu0 0.0
        %655 = vmatprep.subr.mxu0 0.0
        %656 = vmatpush1.msra.mxu0 0.0
        %657 = vmatprep.subr.mxu0 0.0
        %658 = vmatpush1.msra.mxu0 0.0
        %659 = vmatprep.subr.mxu0 0.0
        %660 = vmatpush1.msra.mxu0 0.0
        %661 = vmatprep.subr.mxu0 0.0
        %662 = vmatpush1.msra.mxu0 0.0
        %663 = vmatprep.subr.mxu0 0.0
        %664 = vmatpush1.msra.mxu0 0.0
        %665 = vmatprep.subr.mxu0 0.0
        %666 = vmatpush1.msra.mxu0 0.0
        %667 = vmatprep.subr.mxu0 0.0
        %668 = vmatpush1.msra.mxu0 0.0
        %669 = vmatprep.subr.mxu0 0.0
        %670 = vmatpush1.msra.mxu0 0.0
        %671 = vmatprep.subr.mxu0 0.0
        %672 = vmatpush1.msra.mxu0 0.0
        %673 = vmatprep.subr.mxu0 0.0
        %674 = vmatpush1.msra.mxu0 0.0
        %675 = vmatprep.subr.mxu0 0.0
        %676 = vmatpush1.msra.mxu0 0.0
        %677 = vmatprep.subr.mxu0 0.0
        %678 = vmatpush1.msra.mxu0 0.0
        %679 = vmatprep.subr.mxu0 0.0
        %680 = vmatpush1.msra.mxu0 0.0
        %681 = vmatprep.subr.mxu0 0.0
        %682 = vmatpush1.msra.mxu0 0.0
        %683 = vmatprep.subr.mxu0 0.0
        %684 = vmatpush1.msra.mxu0 0.0
        %685 = vmatprep.subr.mxu0 0.0
        %686 = vmatpush1.msra.mxu0 0.0
        %687 = vmatprep.mubr.f32.mxu0 0.0
        %688 = vmatmul.mubr.f32.gmra.mrb[0].mxu0 %v618
        %v689 = vpop.f32.mrb[0].mxu0
        %v690 = vadd.f32 0.0, %v689
        %v691 = vpop.f32.mrb[0].mxu0
        %v692 = vadd.f32 0.0, %v691
        %693 = vmatprep.mubr.f32.mxu0 0.0
        %694 = vmatmul.mubr.f32.gmra.mrb[0].mxu0 %v621
        %v695 = vpop.f32.mrb[0].mxu0
        %v696 = vadd.f32 0.0, %v695
        %v697 = vpop.f32.mrb[0].mxu0
        %v698 = vadd.f32 0.0, %v697
        %699 = vdwg.mxu0
        %v700 = vadd.f32 %v586, %v690
        %v701 = vadd.f32 %v588, %v692
        %v702 = vadd.f32 %v592, %v696
        %v703 = vadd.f32 %v594, %v698
        %v704 = vld [vmem:[%s2] sm:$0x3]
        %v706 = vlaneseq
        %v707 = vshrl.u32 %v706, 7
        %v708 = vsub.s32 0, %v707
        %v709 = vrot.slane %v704, %v708
        %v710 = vlaneseq
        %v711 = vshrl.u32 %v710, 7
        %v712 = vsub.s32 1, %v711
        %v713 = vrot.slane %v704, %v712
        %v716 = vmul.f32 %v700, %v709
        %v717 = vmul.f32 %v701, %v713
        %v718 = vmul.f32 %v702, %v709
        %v719 = vmul.f32 %v703, %v713
        %v720 = vld [vmem:[%s3] sm:$0x3]
        %v722 = vlaneseq
        %v723 = vshrl.u32 %v722, 7
        %v724 = vsub.s32 0, %v723
        %v725 = vrot.slane %v720, %v724
        %v726 = vlaneseq
        %v727 = vshrl.u32 %v726, 7
        %v728 = vsub.s32 1, %v727
        %v729 = vrot.slane %v720, %v728
        %v732 = vadd.f32 %v716, %v725
        %v733 = vadd.f32 %v717, %v729
        %v734 = vadd.f32 %v718, %v725
        %v735 = vadd.f32 %v719, %v729
        %v736 = vmax.f32 %v732, 0.0
        %v737 = vmax.f32 %v733, 0.0
        %v738 = vmax.f32 %v734, 0.0
        %v739 = vmax.f32 %v735, 0.0
        %vm744 = vcmask 1040384
        %v745 = vrot.slane %v736, 7
        %v746 = vrot.slane %v737, 7
        %v747 = vrot.slane %v738, 7
        %v748 = vsel %vm744, %v745, %v747
        %v749 = vrot.slane %v739, 7
        %v750 = vsel %vm744, %v746, %v749
        %v756 = vsel %vm744, 0.0, %v745
        %v757 = vsel %vm744, 0.0, %v746
        %v758 = vsel %vm744, %v747, 0.0
        %v759 = vsel %vm744, %v749, 0.0
        %v760 = vld [vmem:[#allocation5] sm:$0xff]
        %v761 = vld [vmem:[#allocation5 + $0x8] sm:$0xff]
        %v762 = vld [vmem:[#allocation5 + $0x10] sm:$0xff]
        %v763 = vld [vmem:[#allocation5 + $0x18] sm:$0xff]
        %v764 = vld [vmem:[#allocation5 + $0x20] sm:$0xff]
        %v765 = vld [vmem:[#allocation5 + $0x28] sm:$0xff]
        %v766 = vld [vmem:[#allocation5 + $0x30] sm:$0xff]
        %v767 = vld [vmem:[#allocation5 + $0x38] sm:$0xff]
        %v768 = vld [vmem:[#allocation5 + $0x40] sm:$0xff]
        %v769 = vld [vmem:[#allocation5 + $0x48] sm:$0xff]
        %v770 = vld [vmem:[#allocation5 + $0x50] sm:$0xff]
        %v771 = vld [vmem:[#allocation5 + $0x58] sm:$0xff]
        %v772 = vld [vmem:[#allocation5 + $0x60] sm:$0xff]
        %v773 = vld [vmem:[#allocation5 + $0x68] sm:$0xff]
        %v774 = vld [vmem:[#allocation5 + $0x70] sm:$0xff]
        %v775 = vld [vmem:[#allocation5 + $0x78] sm:$0xff]
        %v776 = vld [vmem:[#allocation5 + $0x80] sm:$0xff]
        %v777 = vld [vmem:[#allocation5 + $0x88] sm:$0xff]
        %s778 = scalar_lea.vmem [#allocation5], 144
        %v779 = vld [vmem:[%s778] sm:$0xff]
        %v780 = vld [vmem:[%s778 + $0x8] sm:$0xff]
        %v781 = vld [vmem:[%s778 + $0x10] sm:$0xff]
        %v782 = vld [vmem:[%s778 + $0x18] sm:$0xff]
        %v783 = vld [vmem:[%s778 + $0x20] sm:$0xff]
        %v784 = vld [vmem:[%s778 + $0x28] sm:$0xff]
        %v785 = vld [vmem:[%s778 + $0x30] sm:$0xff]
        %v786 = vld [vmem:[%s778 + $0x38] sm:$0xff]
        %v787 = vld [vmem:[%s778 + $0x40] sm:$0xff]
        %v788 = vld [vmem:[%s778 + $0x48] sm:$0xff]
        %v789 = vld [vmem:[%s778 + $0x50] sm:$0xff]
        %v790 = vld [vmem:[%s778 + $0x58] sm:$0xff]
        %v791 = vld [vmem:[%s778 + $0x60] sm:$0xff]
        %v792 = vld [vmem:[%s778 + $0x68] sm:$0xff]
        %v793 = vld [vmem:[%s778 + $0x70] sm:$0xff]
        %v794 = vld [vmem:[%s778 + $0x78] sm:$0xff]
        %v795 = vld [vmem:[%s778 + $0x80] sm:$0xff]
        %v796 = vld [vmem:[%s778 + $0x88] sm:$0xff]
        %vm801 = vcmask 1046528
        %v802 = vrot.slane %v756, 1
        %v803 = vrot.slane %v748, 1
        %v804 = vsel %vm801, %v802, %v803
        %v805 = vrot.slane %v757, 1
        %v806 = vrot.slane %v750, 1
        %v807 = vsel %vm801, %v805, %v806
        %v808 = vrot.slane %v758, 1
        %v809 = vsel %vm801, %v803, %v808
        %v810 = vrot.slane %v759, 1
        %v811 = vsel %vm801, %v806, %v810
        %vm814 = vcmask 130048
        %v815 = vsel %vm814, %v807, 0
        %v817 = vsel %vm814, %v811, 0
        %819 = vmatprep.subr.mxu0 0.0
        %820 = vmatpush1.msra.mxu0 %v779
        %821 = vmatprep.subr.mxu0 0.0
        %822 = vmatpush1.msra.mxu0 %v780
        %823 = vmatprep.subr.mxu0 0.0
        %824 = vmatpush1.msra.mxu0 %v781
        %825 = vmatprep.subr.mxu0 0.0
        %826 = vmatpush1.msra.mxu0 %v782
        %827 = vmatprep.subr.mxu0 0.0
        %828 = vmatpush1.msra.mxu0 %v783
        %829 = vmatprep.subr.mxu0 0.0
        %830 = vmatpush1.msra.mxu0 %v784
        %831 = vmatprep.subr.mxu0 0.0
        %832 = vmatpush1.msra.mxu0 %v785
        %833 = vmatprep.subr.mxu0 0.0
        %834 = vmatpush1.msra.mxu0 %v786
        %835 = vmatprep.subr.mxu0 0.0
        %836 = vmatpush1.msra.mxu0 %v787
        %837 = vmatprep.subr.mxu0 0.0
        %838 = vmatpush1.msra.mxu0 %v788
        %839 = vmatprep.subr.mxu0 0.0
        %840 = vmatpush1.msra.mxu0 %v789
        %841 = vmatprep.subr.mxu0 0.0
        %842 = vmatpush1.msra.mxu0 %v790
        %843 = vmatprep.subr.mxu0 0.0
        %844 = vmatpush1.msra.mxu0 %v791
        %845 = vmatprep.subr.mxu0 0.0
        %846 = vmatpush1.msra.mxu0 %v792
        %847 = vmatprep.subr.mxu0 0.0
        %848 = vmatpush1.msra.mxu0 %v793
        %849 = vmatprep.subr.mxu0 0.0
        %850 = vmatpush1.msra.mxu0 %v794
        %851 = vmatprep.subr.mxu0 0.0
        %852 = vmatpush1.msra.mxu0 %v795
        %853 = vmatprep.subr.mxu0 0.0
        %854 = vmatpush1.msra.mxu0 %v796
        %855 = vmatprep.subr.mxu0 0.0
        %856 = vmatpush1.msra.mxu0 0.0
        %857 = vmatprep.subr.mxu0 0.0
        %858 = vmatpush1.msra.mxu0 0.0
        %859 = vmatprep.subr.mxu0 0.0
        %860 = vmatpush1.msra.mxu0 0.0
        %861 = vmatprep.subr.mxu0 0.0
        %862 = vmatpush1.msra.mxu0 0.0
        %863 = vmatprep.subr.mxu0 0.0
        %864 = vmatpush1.msra.mxu0 0.0
        %865 = vmatprep.subr.mxu0 0.0
        %866 = vmatpush1.msra.mxu0 0.0
        %867 = vmatprep.subr.mxu0 0.0
        %868 = vmatpush1.msra.mxu0 0.0
        %869 = vmatprep.subr.mxu0 0.0
        %870 = vmatpush1.msra.mxu0 0.0
        %871 = vmatprep.subr.mxu0 0.0
        %872 = vmatpush1.msra.mxu0 0.0
        %873 = vmatprep.subr.mxu0 0.0
        %874 = vmatpush1.msra.mxu0 0.0
        %875 = vmatprep.subr.mxu0 0.0
        %876 = vmatpush1.msra.mxu0 0.0
        %877 = vmatprep.subr.mxu0 0.0
        %878 = vmatpush1.msra.mxu0 0.0
        %879 = vmatprep.subr.mxu0 0.0
        %880 = vmatpush1.msra.mxu0 0.0
        %881 = vmatprep.subr.mxu0 0.0
        %882 = vmatpush1.msra.mxu0 0.0
        %883 = vmatprep.mubr.f32.mxu0 %v815
        %884 = vmatmul.mubr.f32.gmra.mrb[0].mxu0 %v804
        %v885 = vpop.f32.mrb[0].mxu0
        %v886 = vadd.f32 0.0, %v885
        %v887 = vpop.f32.mrb[0].mxu0
        %888 = vmatprep.mubr.f32.mxu0 %v817
        %889 = vmatmul.mubr.f32.gmra.mrb[0].mxu0 %v809
        %v890 = vpop.f32.mrb[0].mxu0
        %v891 = vadd.f32 0.0, %v890
        %v892 = vpop.f32.mrb[0].mxu0
        %893 = vdwg.mxu0
        %v894 = vsel %vm814, %v757, 0
        %v896 = vsel %vm814, %v750, 0
        %898 = vmatprep.subr.mxu0 0.0
        %899 = vmatpush1.msra.mxu0 %v760
        %900 = vmatprep.subr.mxu0 0.0
        %901 = vmatpush1.msra.mxu0 %v761
        %902 = vmatprep.subr.mxu0 0.0
        %903 = vmatpush1.msra.mxu0 %v762
        %904 = vmatprep.subr.mxu0 0.0
        %905 = vmatpush1.msra.mxu0 %v763
        %906 = vmatprep.subr.mxu0 0.0
        %907 = vmatpush1.msra.mxu0 %v764
        %908 = vmatprep.subr.mxu0 0.0
        %909 = vmatpush1.msra.mxu0 %v765
        %910 = vmatprep.subr.mxu0 0.0
        %911 = vmatpush1.msra.mxu0 %v766
        %912 = vmatprep.subr.mxu0 0.0
        %913 = vmatpush1.msra.mxu0 %v767
        %914 = vmatprep.subr.mxu0 0.0
        %915 = vmatpush1.msra.mxu0 %v768
        %916 = vmatprep.subr.mxu0 0.0
        %917 = vmatpush1.msra.mxu0 %v769
        %918 = vmatprep.subr.mxu0 0.0
        %919 = vmatpush1.msra.mxu0 %v770
        %920 = vmatprep.subr.mxu0 0.0
        %921 = vmatpush1.msra.mxu0 %v771
        %922 = vmatprep.subr.mxu0 0.0
        %923 = vmatpush1.msra.mxu0 %v772
        %924 = vmatprep.subr.mxu0 0.0
        %925 = vmatpush1.msra.mxu0 %v773
        %926 = vmatprep.subr.mxu0 0.0
        %927 = vmatpush1.msra.mxu0 %v774
        %928 = vmatprep.subr.mxu0 0.0
        %929 = vmatpush1.msra.mxu0 %v775
        %930 = vmatprep.subr.mxu0 0.0
        %931 = vmatpush1.msra.mxu0 %v776
        %932 = vmatprep.subr.mxu0 0.0
        %933 = vmatpush1.msra.mxu0 %v777
        %934 = vmatprep.subr.mxu0 0.0
        %935 = vmatpush1.msra.mxu0 0.0
        %936 = vmatprep.subr.mxu0 0.0
        %937 = vmatpush1.msra.mxu0 0.0
        %938 = vmatprep.subr.mxu0 0.0
        %939 = vmatpush1.msra.mxu0 0.0
        %940 = vmatprep.subr.mxu0 0.0
        %941 = vmatpush1.msra.mxu0 0.0
        %942 = vmatprep.subr.mxu0 0.0
        %943 = vmatpush1.msra.mxu0 0.0
        %944 = vmatprep.subr.mxu0 0.0
        %945 = vmatpush1.msra.mxu0 0.0
        %946 = vmatprep.subr.mxu0 0.0
        %947 = vmatpush1.msra.mxu0 0.0
        %948 = vmatprep.subr.mxu0 0.0
        %949 = vmatpush1.msra.mxu0 0.0
        %950 = vmatprep.subr.mxu0 0.0
        %951 = vmatpush1.msra.mxu0 0.0
        %952 = vmatprep.subr.mxu0 0.0
        %953 = vmatpush1.msra.mxu0 0.0
        %954 = vmatprep.subr.mxu0 0.0
        %955 = vmatpush1.msra.mxu0 0.0
        %956 = vmatprep.subr.mxu0 0.0
        %957 = vmatpush1.msra.mxu0 0.0
        %958 = vmatprep.subr.mxu0 0.0
        %959 = vmatpush1.msra.mxu0 0.0
        %960 = vmatprep.subr.mxu0 0.0
        %961 = vmatpush1.msra.mxu0 0.0
        %962 = vmatprep.mubr.f32.mxu0 %v894
        %963 = vmatmul.mubr.f32.gmra.mrb[0].mxu0 %v756
        %v964 = vpop.f32.mrb[0].mxu0
        %v965 = vadd.f32 %v886, %v964
        %v966 = vpop.f32.mrb[0].mxu0
        %967 = vmatprep.mubr.f32.mxu0 %v896
        %968 = vmatmul.mubr.f32.gmra.mrb[0].mxu0 %v748
        %v969 = vpop.f32.mrb[0].mxu0
        %v970 = vadd.f32 %v891, %v969
        %v971 = vpop.f32.mrb[0].mxu0
        %972 = vdwg.mxu0
        %s973 = scalar_lea.vmem [#allocation5], 288
        %v974 = vld [vmem:[%s973] sm:$0xff]
        %v975 = vld [vmem:[%s973 + $0x8] sm:$0xff]
        %v976 = vld [vmem:[%s973 + $0x10] sm:$0xff]
        %v977 = vld [vmem:[%s973 + $0x18] sm:$0xff]
        %v978 = vld [vmem:[%s973 + $0x20] sm:$0xff]
        %v979 = vld [vmem:[%s973 + $0x28] sm:$0xff]
        %v980 = vld [vmem:[%s973 + $0x30] sm:$0xff]
        %v981 = vld [vmem:[%s973 + $0x38] sm:$0xff]
        %v982 = vld [vmem:[%s973 + $0x40] sm:$0xff]
        %v983 = vld [vmem:[%s973 + $0x48] sm:$0xff]
        %v984 = vld [vmem:[%s973 + $0x50] sm:$0xff]
        %v985 = vld [vmem:[%s973 + $0x58] sm:$0xff]
        %v986 = vld [vmem:[%s973 + $0x60] sm:$0xff]
        %v987 = vld [vmem:[%s973 + $0x68] sm:$0xff]
        %v988 = vld [vmem:[%s973 + $0x70] sm:$0xff]
        %v989 = vld [vmem:[%s973 + $0x78] sm:$0xff]
        %v990 = vld [vmem:[%s973 + $0x80] sm:$0xff]
        %v991 = vld [vmem:[%s973 + $0x88] sm:$0xff]
        %vm992 = vcmask 1045504
        %v993 = vrot.slane %v756, 2
        %v994 = vrot.slane %v748, 2
        %v995 = vsel %vm992, %v993, %v994
        %v996 = vrot.slane %v757, 2
        %v997 = vrot.slane %v750, 2
        %v998 = vsel %vm992, %v996, %v997
        %v999 = vrot.slane %v758, 2
        %v1000 = vsel %vm992, %v994, %v999
        %v1001 = vrot.slane %v759, 2
        %v1002 = vsel %vm992, %v997, %v1001
        %v1005 = vsel %vm814, %v998, 0
        %v1007 = vsel %vm814, %v1002, 0
        %1009 = vmatprep.subr.mxu0 0.0
        %1010 = vmatpush1.msra.mxu0 %v974
        %1011 = vmatprep.subr.mxu0 0.0
        %1012 = vmatpush1.msra.mxu0 %v975
        %1013 = vmatprep.subr.mxu0 0.0
        %1014 = vmatpush1.msra.mxu0 %v976
        %1015 = vmatprep.subr.mxu0 0.0
        %1016 = vmatpush1.msra.mxu0 %v977
        %1017 = vmatprep.subr.mxu0 0.0
        %1018 = vmatpush1.msra.mxu0 %v978
        %1019 = vmatprep.subr.mxu0 0.0
        %1020 = vmatpush1.msra.mxu0 %v979
        %1021 = vmatprep.subr.mxu0 0.0
        %1022 = vmatpush1.msra.mxu0 %v980
        %1023 = vmatprep.subr.mxu0 0.0
        %1024 = vmatpush1.msra.mxu0 %v981
        %1025 = vmatprep.subr.mxu0 0.0
        %1026 = vmatpush1.msra.mxu0 %v982
        %1027 = vmatprep.subr.mxu0 0.0
        %1028 = vmatpush1.msra.mxu0 %v983
        %1029 = vmatprep.subr.mxu0 0.0
        %1030 = vmatpush1.msra.mxu0 %v984
        %1031 = vmatprep.subr.mxu0 0.0
        %1032 = vmatpush1.msra.mxu0 %v985
        %1033 = vmatprep.subr.mxu0 0.0
        %1034 = vmatpush1.msra.mxu0 %v986
        %1035 = vmatprep.subr.mxu0 0.0
        %1036 = vmatpush1.msra.mxu0 %v987
        %1037 = vmatprep.subr.mxu0 0.0
        %1038 = vmatpush1.msra.mxu0 %v988
        %1039 = vmatprep.subr.mxu0 0.0
        %1040 = vmatpush1.msra.mxu0 %v989
        %1041 = vmatprep.subr.mxu0 0.0
        %1042 = vmatpush1.msra.mxu0 %v990
        %1043 = vmatprep.subr.mxu0 0.0
        %1044 = vmatpush1.msra.mxu0 %v991
        %1045 = vmatprep.subr.mxu0 0.0
        %1046 = vmatpush1.msra.mxu0 0.0
        %1047 = vmatprep.subr.mxu0 0.0
        %1048 = vmatpush1.msra.mxu0 0.0
        %1049 = vmatprep.subr.mxu0 0.0
        %1050 = vmatpush1.msra.mxu0 0.0
        %1051 = vmatprep.subr.mxu0 0.0
        %1052 = vmatpush1.msra.mxu0 0.0
        %1053 = vmatprep.subr.mxu0 0.0
        %1054 = vmatpush1.msra.mxu0 0.0
        %1055 = vmatprep.subr.mxu0 0.0
        %1056 = vmatpush1.msra.mxu0 0.0
        %1057 = vmatprep.subr.mxu0 0.0
        %1058 = vmatpush1.msra.mxu0 0.0
        %1059 = vmatprep.subr.mxu0 0.0
        %1060 = vmatpush1.msra.mxu0 0.0
        %1061 = vmatprep.subr.mxu0 0.0
        %1062 = vmatpush1.msra.mxu0 0.0
        %1063 = vmatprep.subr.mxu0 0.0
        %1064 = vmatpush1.msra.mxu0 0.0
        %1065 = vmatprep.subr.mxu0 0.0
        %1066 = vmatpush1.msra.mxu0 0.0
        %1067 = vmatprep.subr.mxu0 0.0
        %1068 = vmatpush1.msra.mxu0 0.0
        %1069 = vmatprep.subr.mxu0 0.0
        %1070 = vmatpush1.msra.mxu0 0.0
        %1071 = vmatprep.subr.mxu0 0.0
        %1072 = vmatpush1.msra.mxu0 0.0
        %1073 = vmatprep.mubr.f32.mxu0 %v1005
        %1074 = vmatmul.mubr.f32.gmra.mrb[0].mxu0 %v995
        %v1075 = vpop.f32.mrb[0].mxu0
        %v1076 = vadd.f32 0.0, %v1075
        %v1077 = vpop.f32.mrb[0].mxu0
        %1078 = vmatprep.mubr.f32.mxu0 %v1007
        %1079 = vmatmul.mubr.f32.gmra.mrb[0].mxu0 %v1000
        %v1080 = vpop.f32.mrb[0].mxu0
        %v1081 = vadd.f32 0.0, %v1080
        %v1082 = vpop.f32.mrb[0].mxu0
        %1083 = vdwg.mxu0
        %v1084 = vadd.f32 %v965, %v1076
        %v1085 = vadd.f32 %v970, %v1081
        %v1086 = vld [vmem:[%s5] sm:$0x1]
        %v1088 = vlaneseq
        %v1089 = vshrl.u32 %v1088, 7
        %v1090 = vsub.s32 0, %v1089
        %v1091 = vrot.slane %v1086, %v1090
        %v1093 = vmul.f32 %v1084, %v1091
        %v1094 = vmul.f32 %v1085, %v1091
        %v1095 = vld [vmem:[%s6] sm:$0x1]
        %v1097 = vlaneseq
        %v1098 = vshrl.u32 %v1097, 7
        %v1099 = vsub.s32 0, %v1098
        %v1100 = vrot.slane %v1095, %v1099
        %v1102 = vadd.f32 %v1093, %v1100
        %v1103 = vadd.f32 %v1094, %v1100
        %v1104 = vld [vmem:[%s7] sm:$0xff]
        %v1105 = vld [vmem:[%s7 + $0x8] sm:$0xff]
        %v1106 = vld [vmem:[%s7 + $0x10] sm:$0xff]
        %v1107 = vld [vmem:[%s7 + $0x18] sm:$0xff]
        %v1108 = vld [vmem:[%s7 + $0x20] sm:$0xff]
        %v1109 = vld [vmem:[%s7 + $0x28] sm:$0xff]
        %v1110 = vld [vmem:[%s7 + $0x30] sm:$0xff]
        %v1111 = vld [vmem:[%s7 + $0x38] sm:$0xff]
        %v1112 = vld [vmem:[%s7 + $0x40] sm:$0xff]
        %1113 = vmatprep.subr.mxu0 0.0
        %1114 = vmatpush1.msra.mxu0 %v1104
        %1115 = vmatprep.subr.mxu0 0.0
        %1116 = vmatpush1.msra.mxu0 %v1105
        %1117 = vmatprep.subr.mxu0 0.0
        %1118 = vmatpush1.msra.mxu0 %v1106
        %1119 = vmatprep.subr.mxu0 0.0
        %1120 = vmatpush1.msra.mxu0 %v1107
        %1121 = vmatprep.subr.mxu0 0.0
        %1122 = vmatpush1.msra.mxu0 %v1108
        %1123 = vmatprep.subr.mxu0 0.0
        %1124 = vmatpush1.msra.mxu0 %v1109
        %1125 = vmatprep.subr.mxu0 0.0
        %1126 = vmatpush1.msra.mxu0 %v1110
        %1127 = vmatprep.subr.mxu0 0.0
        %1128 = vmatpush1.msra.mxu0 %v1111
        %1129 = vmatprep.subr.mxu0 0.0
        %1130 = vmatpush1.msra.mxu0 %v1112
        %1131 = vmatprep.subr.mxu0 0.0
        %1132 = vmatpush1.msra.mxu0 0.0
        %1133 = vmatprep.subr.mxu0 0.0
        %1134 = vmatpush1.msra.mxu0 0.0
        %1135 = vmatprep.subr.mxu0 0.0
        %1136 = vmatpush1.msra.mxu0 0.0
        %1137 = vmatprep.subr.mxu0 0.0
        %1138 = vmatpush1.msra.mxu0 0.0
        %1139 = vmatprep.subr.mxu0 0.0
        %1140 = vmatpush1.msra.mxu0 0.0
        %1141 = vmatprep.subr.mxu0 0.0
        %1142 = vmatpush1.msra.mxu0 0.0
        %1143 = vmatprep.subr.mxu0 0.0
        %1144 = vmatpush1.msra.mxu0 0.0
        %1145 = vmatprep.subr.mxu0 0.0
        %1146 = vmatpush1.msra.mxu0 0.0
        %1147 = vmatprep.subr.mxu0 0.0
        %1148 = vmatpush1.msra.mxu0 0.0
        %1149 = vmatprep.subr.mxu0 0.0
        %1150 = vmatpush1.msra.mxu0 0.0
        %1151 = vmatprep.subr.mxu0 0.0
        %1152 = vmatpush1.msra.mxu0 0.0
        %1153 = vmatprep.subr.mxu0 0.0
        %1154 = vmatpush1.msra.mxu0 0.0
        %1155 = vmatprep.subr.mxu0 0.0
        %1156 = vmatpush1.msra.mxu0 0.0
        %1157 = vmatprep.subr.mxu0 0.0
        %1158 = vmatpush1.msra.mxu0 0.0
        %1159 = vmatprep.subr.mxu0 0.0
        %1160 = vmatpush1.msra.mxu0 0.0
        %1161 = vmatprep.subr.mxu0 0.0
        %1162 = vmatpush1.msra.mxu0 0.0
        %1163 = vmatprep.subr.mxu0 0.0
        %1164 = vmatpush1.msra.mxu0 0.0
        %1165 = vmatprep.subr.mxu0 0.0
        %1166 = vmatpush1.msra.mxu0 0.0
        %1167 = vmatprep.subr.mxu0 0.0
        %1168 = vmatpush1.msra.mxu0 0.0
        %1169 = vmatprep.subr.mxu0 0.0
        %1170 = vmatpush1.msra.mxu0 0.0
        %1171 = vmatprep.subr.mxu0 0.0
        %1172 = vmatpush1.msra.mxu0 0.0
        %1173 = vmatprep.subr.mxu0 0.0
        %1174 = vmatpush1.msra.mxu0 0.0
        %1175 = vmatprep.subr.mxu0 0.0
        %1176 = vmatpush1.msra.mxu0 0.0
        %1177 = vmatprep.mubr.f32.mxu0 0.0
        %1178 = vmatmul.mubr.f32.gmra.mrb[0].mxu0 %v431
        %v1179 = vpop.f32.mrb[0].mxu0
        %v1180 = vadd.f32 0.0, %v1179
        %v1181 = vpop.f32.mrb[0].mxu0
        %1182 = vmatprep.mubr.f32.mxu0 0.0
        %1183 = vmatmul.mubr.f32.gmra.mrb[0].mxu0 %v434
        %v1184 = vpop.f32.mrb[0].mxu0
        %v1185 = vadd.f32 0.0, %v1184
        %v1186 = vpop.f32.mrb[0].mxu0
        %1187 = vdwg.mxu0
        %v1188 = vld [vmem:[%s8] sm:$0x1]
        %v1190 = vlaneseq
        %v1191 = vshrl.u32 %v1190, 7
        %v1192 = vsub.s32 0, %v1191
        %v1193 = vrot.slane %v1188, %v1192
        %v1195 = vmul.f32 %v1180, %v1193
        %v1196 = vmul.f32 %v1185, %v1193
        %v1197 = vld [vmem:[%s9] sm:$0x1]
        %v1199 = vlaneseq
        %v1200 = vshrl.u32 %v1199, 7
        %v1201 = vsub.s32 0, %v1200
        %v1202 = vrot.slane %v1197, %v1201
        %v1204 = vadd.f32 %v1195, %v1202
        %v1205 = vadd.f32 %v1196, %v1202
        %v1206 = vadd.f32 %v1102, %v1204
        %v1207 = vadd.f32 %v1103, %v1205
        %v1208 = vmax.f32 %v1206, 0.0
        %v1209 = vmax.f32 %v1207, 0.0
        %1210 = vst [vmem:[%s382] sm:$0xff] %v1208
        %1211 = vst [vmem:[%s382 + $0x8] sm:$0xff] %v1209
        %s1212 = sand.u32 %s249, 1
        %s1213 = scalar_lea.sflag [#allocation4], %s1212
        %s1214 = sand.u32 %s249, 1
        %s1215 = smul.addr %s1214, 16
        %s1216 = scalar_lea.vmem [#allocation7], %s1215
        // Predicated region
        $region69: #{tpu_custom_call.1} parent=59 // pred_check
          %p1217 = pneg %p259
        $region70: #{tpu_custom_call.1} parent=59 // pred_check_branch
          %1219 = sbr.rel (%p1217) target = $region72
        $region71: #{tpu_custom_call.1} parent=59 // pred_region
          %s1221 = ssub.s32 256, 256
          %1222 = vsyncadd %s1213, %s1221
          %s1223 = smul.addr %s26, 2
          %s1224 = smul.addr %s1223, 128
          %s1225 = scalar_lea.hbm %s10, %s1224
          %s1226 = sshll.u32 %s1216, 4
          %s1227 = int_to_ptr.vmem [resolvable:$true] %s1226
          %1232 = dma.vmem_to_hbm [thread:$0]  %s1227, 256, %s1225, %s1213, 128, 128, 8
        $region72: #{tpu_custom_call.1} parent=59 // pred_fallthru
          _
      $region60: #{tpu_custom_call.1} parent=5 // pred_fallthru
        _
      %p1233 = scmp.le.s32.totalorder 2, %s21
      // Predicated region
      $region73: #{tpu_custom_call.1} parent=5 // pred_check
        %p1234 = pneg %p1233
      $region74: #{tpu_custom_call.1} parent=5 // pred_check_branch
        %1236 = sbr.rel (%p1234) target = $region76
      $region75: #{tpu_custom_call.1} parent=5 // pred_region
        %s1237 = ssub.s32 %s21, 2
        // Predicated region
        $region77: #{tpu_custom_call.1} parent=75 // pred_check
          %p1238 = pneg %p265
        $region78: #{tpu_custom_call.1} parent=75 // pred_check_branch
          %1240 = sbr.rel (%p1238) target = $region80
        $region79: #{tpu_custom_call.1} parent=75 // pred_region
          %s1241 = sand.u32 %s250, 1
          %s1242 = scalar_lea.sflag [#allocation4], %s1241
          %s1243 = sand.u32 %s250, 1
          %s1244 = smul.addr %s1243, 16
          %s1245 = scalar_lea.vmem [#allocation7], %s1244
          %1246 = dma.done %s1242, 256
        $region80: #{tpu_custom_call.1} parent=75 // pred_fallthru
          _
      $region76: #{tpu_custom_call.1} parent=5 // pred_fallthru
        _
    $region6: #{tpu_custom_call.1} parent=1 // loop_footer
      %s25 = sadd.s32 1, %s21
    $region7: #{tpu_custom_call.1} parent=1 // loop_footer_branch
      %20 = sbr.rel target = $region3
    $region8: #{tpu_custom_call.1} parent=1 // loop_exit
      _
    %1247 = vsyncpa [#allocation3], 1
    %s1248 = scalar_lea.sflag [#allocation3], 1
    %1249 = vsyncpa %s1248, 1
    %1250 = vsyncpa [#allocation6], 1
    %1251 = vsyncpa [#allocation4], 1
    %s1252 = scalar_lea.sflag [#allocation4], 1
    %1253 = vsyncpa %s1252, 1

</llo_original>
